<compile_context>
chip_gen: v5e
topology: v5e:2x2
jax: 0.10.0
libtpu: 0.0.40
codegen_flags: <defaults>
</compile_context>

<pallas_src>
import functools
import math

import jax
import jax.numpy as jnp
from jax.experimental import pallas as pl
from jax.experimental.pallas import tpu as pltpu

# ---- small synthetic BERT config (same structure as BertForSequenceClassification) ----
VOCAB = 64
TYPE_VOCAB = 2
MAX_POS = 16
HIDDEN = 32
NUM_HEADS = 2
HEAD_DIM = HIDDEN // NUM_HEADS
INTERMEDIATE = 64
NUM_LAYERS = 2
NUM_LABELS = 2
LN_EPS = 1e-12


def _gelu(x):
    # TODO(synk): HF BERT uses erf-GELU; tanh approximation deviates by ~1e-3.
    c = math.sqrt(2.0 / math.pi)
    return 0.5 * x * (1.0 + jnp.tanh(c * (x + 0.044715 * x * x * x)))


def _layernorm(h, g, b):
    mu = jnp.mean(h, axis=-1, keepdims=True)
    var = jnp.mean((h - mu) * (h - mu), axis=-1, keepdims=True)
    return (h - mu) * jax.lax.rsqrt(var + LN_EPS) * g + b


# ------------------------- fused encoder kernel -------------------------

def _encoder_kernel(x_ref, mask_ref, emb_g_ref, emb_b_ref,
                    qkv_w_ref, qkv_b_ref, o_w_ref, o_b_ref,
                    aln_g_ref, aln_b_ref,
                    w1_ref, b1_ref, w2_ref, b2_ref,
                    oln_g_ref, oln_b_ref,
                    out_ref, x_sc, *, num_heads, head_dim):
    layer = pl.program_id(0)
    hidden = num_heads * head_dim
    scale = 1.0 / math.sqrt(head_dim)

    # Layer 0: embedding LayerNorm (no residual, no zero buffer DMA'd from HBM).
    @pl.when(layer == 0)
    def _():
        x_sc[...] = _layernorm(x_ref[...], emb_g_ref[...], emb_b_ref[...])

    x = x_sc[...]                 # (M, H) activation, resident in VMEM
    mask = mask_ref[...]          # (M, M) additive mask (padding + block-diagonal batch)

    # ---- fused QKV projection: a single (H, 3H) matmul ----
    qkv = jnp.dot(x, qkv_w_ref[0],
                  preferred_element_type=jnp.float32) + qkv_b_ref[0]      # (M, 3H)

    # ---- attention (all batches at once per head) + output projection ----
    o_w = o_w_ref[0]                                                      # (H, H)
    attn_acc = None
    for h in range(num_heads):
        c0 = h * head_dim
        q_h = qkv[:, c0:c0 + head_dim]                                    # (M, DH)
        k_h = qkv[:, hidden + c0:hidden + c0 + head_dim]                  # (M, DH)
        v_h = qkv[:, 2 * hidden + c0:2 * hidden + c0 + head_dim]          # (M, DH)
        s = jax.lax.dot_general(q_h, k_h, (((1,), (1,)), ((), ())),
                                preferred_element_type=jnp.float32)
        s = s * scale + mask                                              # (M, M)
        s_max = jnp.max(s, axis=-1, keepdims=True)
        e = jnp.exp(s - s_max)
        p = e * pl.reciprocal(jnp.sum(e, axis=-1, keepdims=True), approx=True)
        ctx_h = jnp.dot(p, v_h, preferred_element_type=jnp.float32)       # (M, DH)
        # output projection folded in per head: ctx @ o_w[rows of head h]
        part = jnp.dot(ctx_h, o_w[c0:c0 + head_dim, :],
                       preferred_element_type=jnp.float32)                # (M, H)
        attn_acc = part if attn_acc is None else attn_acc + part
    attn_out = attn_acc + o_b_ref[0]

    # ---- residual + LayerNorm (attention output) ----
    x1 = _layernorm(attn_out + x, aln_g_ref[0], aln_b_ref[0])

    # ---- fused FFN: matmul + GELU + matmul, intermediate stays in VMEM ----
    inter = _gelu(jnp.dot(x1, w1_ref[0],
                          preferred_element_type=jnp.float32) + b1_ref[0])
    ffn_out = jnp.dot(inter, w2_ref[0],
                      preferred_element_type=jnp.float32) + b2_ref[0]

    # ---- residual + LayerNorm (FFN output) ----
    x2 = _layernorm(ffn_out + x1, oln_g_ref[0], oln_b_ref[0])

    x_sc[...] = x2
    out_ref[...] = x2


def bert_encoder(x, mask2d, params):
    m_tokens, hidden = x.shape
    inter = INTERMEDIATE
    layers = NUM_LAYERS

    def const(shape):
        return pl.BlockSpec(shape, lambda l: (0, 0))

    def per_layer(shape):
        return pl.BlockSpec((1,) + shape, lambda l: (l, 0, 0))

    kernel = functools.partial(_encoder_kernel,
                               num_heads=NUM_HEADS, head_dim=HEAD_DIM)
    return pl.pallas_call(
        kernel,
        grid=(layers,),
        in_specs=[
            const((m_tokens, hidden)),                   # embeddings
            const((m_tokens, m_tokens)),                 # additive attention mask
            const((1, hidden)), const((1, hidden)),      # embedding LN gamma/beta
            per_layer((hidden, 3 * hidden)), per_layer((1, 3 * hidden)),   # QKV
            per_layer((hidden, hidden)), per_layer((1, hidden)),           # attn out proj
            per_layer((1, hidden)), per_layer((1, hidden)),                # attn LN
            per_layer((hidden, inter)), per_layer((1, inter)),             # FFN w1/b1
            per_layer((inter, hidden)), per_layer((1, hidden)),            # FFN w2/b2
            per_layer((1, hidden)), per_layer((1, hidden)),                # out LN
        ],
        out_specs=pl.BlockSpec((m_tokens, hidden), lambda l: (0, 0)),
        out_shape=jax.ShapeDtypeStruct((m_tokens, hidden), jnp.float32),
        scratch_shapes=[pltpu.VMEM((m_tokens, hidden), jnp.float32)],
        compiler_params=pltpu.CompilerParams(
            dimension_semantics=("arbitrary",)),          # layers are sequential
    )(x, mask2d,
      params["emb_ln_g"], params["emb_ln_b"],
      params["qkv_w"], params["qkv_b"],
      params["o_w"], params["o_b"],
      params["attn_ln_g"], params["attn_ln_b"],
      params["ffn_w1"], params["ffn_b1"],
      params["ffn_w2"], params["ffn_b2"],
      params["out_ln_g"], params["out_ln_b"])


# ------------------------- fused classification head kernel -------------------------

def _head_kernel(cls_ref, pw_ref, pb_ref, cw_ref, cb_ref, oh_ref,
                 loss_ref, logits_ref, probs_ref):
    pooled = jnp.tanh(jnp.dot(cls_ref[...], pw_ref[...],
                              preferred_element_type=jnp.float32) + pb_ref[...])
    logits = jnp.dot(pooled, cw_ref[...],
                     preferred_element_type=jnp.float32) + cb_ref[...]
    logits_ref[...] = logits
    m = jnp.max(logits, axis=-1, keepdims=True)
    e = jnp.exp(logits - m)
    z = jnp.sum(e, axis=-1, keepdims=True)
    probs_ref[...] = e * pl.reciprocal(z, approx=True)
    logp = (logits - m) - jnp.log(z)
    nll = -jnp.sum(oh_ref[...] * logp, axis=-1, keepdims=True)    # (B, 1)
    loss_ref[...] = jnp.sum(nll, axis=0, keepdims=True) * (1.0 / nll.shape[0])


def cls_head(cls_tok, onehot, params):
    batch, hidden = cls_tok.shape
    nlab = NUM_LABELS
    loss, logits, probs = pl.pallas_call(
        _head_kernel,
        grid=(1,),
        in_specs=[
            pl.BlockSpec((batch, hidden), lambda i: (0, 0)),
            pl.BlockSpec((hidden, hidden), lambda i: (0, 0)),
            pl.BlockSpec((1, hidden), lambda i: (0, 0)),
            pl.BlockSpec((hidden, nlab), lambda i: (0, 0)),
            pl.BlockSpec((1, nlab), lambda i: (0, 0)),
            pl.BlockSpec((batch, nlab), lambda i: (0, 0)),
        ],
        out_specs=(pl.BlockSpec((1, 1), lambda i: (0, 0)),
                   pl.BlockSpec((batch, nlab), lambda i: (0, 0)),
                   pl.BlockSpec((batch, nlab), lambda i: (0, 0))),
        out_shape=(jax.ShapeDtypeStruct((1, 1), jnp.float32),
                   jax.ShapeDtypeStruct((batch, nlab), jnp.float32),
                   jax.ShapeDtypeStruct((batch, nlab), jnp.float32)),
    )(cls_tok, params["pooler_w"], params["pooler_b"],
      params["cls_w"], params["cls_b"], onehot)
    return loss, logits, probs


# ------------------------- parameters -------------------------

def init_params(key):
    keys = iter(jax.random.split(key, 64))

    def w(shape):
        return jax.random.normal(next(keys), shape, jnp.float32) * 0.02

    layers, hidden, inter = NUM_LAYERS, HIDDEN, INTERMEDIATE
    return dict(
        word_emb=w((VOCAB, hidden)),
        pos_emb=w((MAX_POS, hidden)),
        type_emb=w((TYPE_VOCAB, hidden)),
        emb_ln_g=jnp.ones((1, hidden), jnp.float32),
        emb_ln_b=jnp.zeros((1, hidden), jnp.float32),
        # Per-layer weights stacked on a leading layer axis; QKV concatenated
        # as [q | k | v] along the output (last) axis.
        qkv_w=w((layers, hidden, 3 * hidden)),
        qkv_b=jnp.zeros((layers, 1, 3 * hidden), jnp.float32),
        o_w=w((layers, hidden, hidden)),
        o_b=jnp.zeros((layers, 1, hidden), jnp.float32),
        attn_ln_g=jnp.ones((layers, 1, hidden), jnp.float32),
        attn_ln_b=jnp.zeros((layers, 1, hidden), jnp.float32),
        ffn_w1=w((layers, hidden, inter)),
        ffn_b1=jnp.zeros((layers, 1, inter), jnp.float32),
        ffn_w2=w((layers, inter, hidden)),
        ffn_b2=jnp.zeros((layers, 1, hidden), jnp.float32),
        out_ln_g=jnp.ones((layers, 1, hidden), jnp.float32),
        out_ln_b=jnp.zeros((layers, 1, hidden), jnp.float32),
        pooler_w=w((hidden, hidden)),
        pooler_b=jnp.zeros((1, hidden), jnp.float32),
        cls_w=w((hidden, NUM_LABELS)),
        cls_b=jnp.zeros((1, NUM_LABELS), jnp.float32),
    )


# ------------------------- forward pass -------------------------

def bert_model_train_forward(params, seqs, seq_masks, seq_segments, labels):
    """Returns (loss, logits, probabilities), matching BertModelTrain.forward."""
    B, S = seqs.shape
    M = B * S

    # Embeddings (table gathers are plain-JAX glue).
    x = (params["word_emb"][seqs]
         + params["pos_emb"][None, :S, :]
         + params["type_emb"][seq_segments]).reshape(M, HIDDEN)

    # Additive attention mask over flattened tokens:
    #   -10000 for padded keys (HF convention) and for cross-batch pairs
    #   (block-diagonal), so one (M, M) score matrix per head is equivalent to
    #   per-batch attention.
    key_pad = seq_masks.astype(jnp.float32).reshape(M)             # 1 = real token
    tok_batch = jnp.arange(M, dtype=jnp.int32) // S
    same_batch = (tok_batch[:, None] == tok_batch[None, :]).astype(jnp.float32)
    mask2d = (1.0 - same_batch * key_pad[None, :]) * -10000.0      # (M, M)

    # TODO(synk): dropout layers omitted (train-mode stochasticity not replicated).
    x = bert_encoder(x, mask2d, params)

    cls_tok = x.reshape(B, S, HIDDEN)[:, 0, :]                     # [CLS] tokens
    onehot = jax.nn.one_hot(labels, NUM_LABELS, dtype=jnp.float32)
    loss, logits, probabilities = cls_head(cls_tok, onehot, params)
    return loss[0, 0], logits, probabilities


if __name__ == "__main__":
    key = jax.random.PRNGKey(0)
    pkey, dkey = jax.random.split(key)
    params = init_params(pkey)

    B, S = 2, 8
    k1, k2, k3 = jax.random.split(dkey, 3)
    seqs = jax.random.randint(k1, (B, S), 0, VOCAB, dtype=jnp.int32)
    seq_masks = jnp.ones((B, S), jnp.int32).at[:, S - 2:].set(0)      # pad last 2 tokens
    seq_segments = jnp.concatenate(
        [jnp.zeros((B, S // 2), jnp.int32), jnp.ones((B, S // 2), jnp.int32)], axis=1)
    labels = jax.random.randint(k3, (B,), 0, NUM_LABELS, dtype=jnp.int32)

    fwd = jax.jit(functools.partial(bert_model_train_forward, params))
    loss, logits, probs = fwd(seqs, seq_masks, seq_segments, labels)
    jax.block_until_ready((loss, logits, probs))

    assert logits.shape == (B, NUM_LABELS)
    assert probs.shape == (B, NUM_LABELS)
    assert loss.shape == ()
    assert bool(jnp.isfinite(loss))
    print("KERNEL_OK")
</pallas_src>

<mosaic_0001>
module attributes {stable_mosaic.version = 11 : i64} {
  func.func @_encoder_kernel(%arg0: i32, %arg1: memref<16x32xf32, #tpu.memory_space<vmem>>, %arg2: memref<16x16xf32, #tpu.memory_space<vmem>>, %arg3: memref<1x32xf32, #tpu.memory_space<vmem>>, %arg4: memref<1x32xf32, #tpu.memory_space<vmem>>, %arg5: memref<1x32x96xf32, #tpu.memory_space<vmem>>, %arg6: memref<1x1x96xf32, #tpu.memory_space<vmem>>, %arg7: memref<1x32x32xf32, #tpu.memory_space<vmem>>, %arg8: memref<1x1x32xf32, #tpu.memory_space<vmem>>, %arg9: memref<1x1x32xf32, #tpu.memory_space<vmem>>, %arg10: memref<1x1x32xf32, #tpu.memory_space<vmem>>, %arg11: memref<1x32x64xf32, #tpu.memory_space<vmem>>, %arg12: memref<1x1x64xf32, #tpu.memory_space<vmem>>, %arg13: memref<1x64x32xf32, #tpu.memory_space<vmem>>, %arg14: memref<1x1x32xf32, #tpu.memory_space<vmem>>, %arg15: memref<1x1x32xf32, #tpu.memory_space<vmem>>, %arg16: memref<1x1x32xf32, #tpu.memory_space<vmem>>, %arg17: memref<16x32xf32, #tpu.memory_space<vmem>>, %arg18: memref<16x32xf32, #tpu.memory_space<vmem>>) attributes {dimension_semantics = [#tpu.dimension_semantics<arbitrary>], iteration_bounds = array<i64: 2>, scalar_prefetch = 0 : i64, scratch_operands = 1 : i64, tpu.core_type = #tpu.core_type<tc>, window_params = [{pipeline_mode = #tpu.pipeline_mode<synchronous>, transform_indices = @transform_0, window_bounds = array<i64: 16, 32>}, {pipeline_mode = #tpu.pipeline_mode<synchronous>, transform_indices = @transform_1, window_bounds = array<i64: 16, 16>}, {pipeline_mode = #tpu.pipeline_mode<synchronous>, transform_indices = @transform_2, window_bounds = array<i64: 1, 32>}, {pipeline_mode = #tpu.pipeline_mode<synchronous>, transform_indices = @transform_3, window_bounds = array<i64: 1, 32>}, {transform_indices = @transform_4, window_bounds = array<i64: 1, 32, 96>}, {transform_indices = @transform_5, window_bounds = array<i64: 1, 1, 96>}, {transform_indices = @transform_6, window_bounds = array<i64: 1, 32, 32>}, {transform_indices = @transform_7, window_bounds = array<i64: 1, 1, 32>}, {transform_indices = @transform_8, window_bounds = array<i64: 1, 1, 32>}, {transform_indices = @transform_9, window_bounds = array<i64: 1, 1, 32>}, {transform_indices = @transform_10, window_bounds = array<i64: 1, 32, 64>}, {transform_indices = @transform_11, window_bounds = array<i64: 1, 1, 64>}, {transform_indices = @transform_12, window_bounds = array<i64: 1, 64, 32>}, {transform_indices = @transform_13, window_bounds = array<i64: 1, 1, 32>}, {transform_indices = @transform_14, window_bounds = array<i64: 1, 1, 32>}, {transform_indices = @transform_15, window_bounds = array<i64: 1, 1, 32>}, {pipeline_mode = #tpu.pipeline_mode<synchronous>, transform_indices = @transform_16, window_bounds = array<i64: 16, 32>}]} {
    %c0_i32 = arith.constant 0 : i32
    %0 = arith.cmpi eq, %arg0, %c0_i32 : i32
    %1 = arith.extui %0 : i1 to i32
    %c0_i32_0 = arith.constant 0 : i32
    %2 = arith.cmpi ne, %1, %c0_i32_0 : i32
    scf.if %2 {
      %c0_72 = arith.constant 0 : index
      %c0_73 = arith.constant 0 : index
      %146 = vector.load %arg1[%c0_72, %c0_73] : memref<16x32xf32, #tpu.memory_space<vmem>>, vector<16x32xf32>
      %c0_74 = arith.constant 0 : index
      %c0_75 = arith.constant 0 : index
      %147 = vector.load %arg3[%c0_74, %c0_75] : memref<1x32xf32, #tpu.memory_space<vmem>>, vector<1x32xf32>
      %c0_76 = arith.constant 0 : index
      %c0_77 = arith.constant 0 : index
      %148 = vector.load %arg4[%c0_76, %c0_77] : memref<1x32xf32, #tpu.memory_space<vmem>>, vector<1x32xf32>
      %cst_78 = arith.constant dense<0.000000e+00> : vector<16xf32>
      %149 = vector.multi_reduction <add>, %146, %cst_78 [1] : vector<16x32xf32> to vector<16xf32>
      %150 = vector.shape_cast %149 : vector<16xf32> to vector<16x1xf32>
      %cst_79 = arith.constant 3.200000e+01 : f32
      %151 = vector.broadcast %cst_79 : f32 to vector<16x1xf32>
      %152 = arith.divf %150, %151 : vector<16x1xf32>
      %153 = vector.broadcast %152 : vector<16x1xf32> to vector<16x32xf32>
      %154 = arith.subf %146, %153 : vector<16x32xf32>
      %155 = vector.broadcast %152 : vector<16x1xf32> to vector<16x32xf32>
      %156 = arith.subf %146, %155 : vector<16x32xf32>
      %157 = arith.mulf %154, %156 : vector<16x32xf32>
      %cst_80 = arith.constant dense<0.000000e+00> : vector<16xf32>
      %158 = vector.multi_reduction <add>, %157, %cst_80 [1] : vector<16x32xf32> to vector<16xf32>
      %159 = vector.shape_cast %158 : vector<16xf32> to vector<16x1xf32>
      %cst_81 = arith.constant 3.200000e+01 : f32
      %160 = vector.broadcast %cst_81 : f32 to vector<16x1xf32>
      %161 = arith.divf %159, %160 : vector<16x1xf32>
      %162 = vector.broadcast %152 : vector<16x1xf32> to vector<16x32xf32>
      %163 = arith.subf %146, %162 : vector<16x32xf32>
      %cst_82 = arith.constant 9.99999996E-13 : f32
      %164 = vector.broadcast %cst_82 : f32 to vector<16x1xf32>
      %165 = arith.addf %161, %164 : vector<16x1xf32>
      %166 = math.rsqrt %165 : vector<16x1xf32>
      %167 = vector.broadcast %166 : vector<16x1xf32> to vector<16x32xf32>
      %168 = arith.mulf %163, %167 : vector<16x32xf32>
      %169 = vector.broadcast %147 : vector<1x32xf32> to vector<16x32xf32>
      %170 = arith.mulf %168, %169 : vector<16x32xf32>
      %171 = vector.broadcast %148 : vector<1x32xf32> to vector<16x32xf32>
      %172 = arith.addf %170, %171 : vector<16x32xf32>
      %c0_83 = arith.constant 0 : index
      %c0_84 = arith.constant 0 : index
      %173 = vector.load %arg18[%c0_83, %c0_84] : memref<16x32xf32, #tpu.memory_space<vmem>>, vector<16x32xf32>
      tpu.vector_store %arg18[%c0_83, %c0_84], %172 {strides = array<i32>} : memref<16x32xf32, #tpu.memory_space<vmem>>, vector<16x32xf32>,
    } else {
    }
    %c0 = arith.constant 0 : index
    %c0_1 = arith.constant 0 : index
    %3 = vector.load %arg18[%c0, %c0_1] : memref<16x32xf32, #tpu.memory_space<vmem>>, vector<16x32xf32>
    %c0_2 = arith.constant 0 : index
    %c0_3 = arith.constant 0 : index
    %4 = vector.load %arg2[%c0_2, %c0_3] : memref<16x16xf32, #tpu.memory_space<vmem>>, vector<16x16xf32>
    %c0_4 = arith.constant 0 : index
    %c0_5 = arith.constant 0 : index
    %c0_6 = arith.constant 0 : index
    %5 = vector.load %arg5[%c0_4, %c0_5, %c0_6] : memref<1x32x96xf32, #tpu.memory_space<vmem>>, vector<1x32x96xf32>
    %6 = vector.shape_cast %5 : vector<1x32x96xf32> to vector<32x96xf32>
    %cst = arith.constant dense<0.000000e+00> : vector<16x96xf32>
    %7 = tpu.matmul %3, %6, %cst {dimension_numbers = #tpu.dot_dimension_numbers<[1], [0], [0], [1], [0, 0, 1, 1], [], []>} : vector<16x32xf32>, vector<32x96xf32>, vector<16x96xf32> -> vector<16x96xf32>
    %c0_7 = arith.constant 0 : index
    %c0_8 = arith.constant 0 : index
    %c0_9 = arith.constant 0 : index
    %8 = vector.load %arg6[%c0_7, %c0_8, %c0_9] : memref<1x1x96xf32, #tpu.memory_space<vmem>>, vector<1x1x96xf32>
    %9 = vector.shape_cast %8 : vector<1x1x96xf32> to vector<1x96xf32>
    %10 = vector.broadcast %9 : vector<1x96xf32> to vector<16x96xf32>
    %11 = arith.addf %7, %10 : vector<16x96xf32>
    %c0_10 = arith.constant 0 : index
    %c0_11 = arith.constant 0 : index
    %c0_12 = arith.constant 0 : index
    %12 = vector.load %arg7[%c0_10, %c0_11, %c0_12] : memref<1x32x32xf32, #tpu.memory_space<vmem>>, vector<1x32x32xf32>
    %13 = vector.shape_cast %12 : vector<1x32x32xf32> to vector<32x32xf32>
    %14 = vector.extract_strided_slice %11 {offsets = [0, 0], sizes = [16, 16], strides = [1, 1]} : vector<16x96xf32> to vector<16x16xf32>
    %15 = vector.extract_strided_slice %11 {offsets = [0, 32], sizes = [16, 16], strides = [1, 1]} : vector<16x96xf32> to vector<16x16xf32>
    %16 = vector.extract_strided_slice %11 {offsets = [0, 64], sizes = [16, 16], strides = [1, 1]} : vector<16x96xf32> to vector<16x16xf32>
    %cst_13 = arith.constant dense<0.000000e+00> : vector<16x16xf32>
    %17 = tpu.matmul %14, %15, %cst_13 {dimension_numbers = #tpu.dot_dimension_numbers<[1], [1], [0], [0], [0, 0, 1, 0], [], []>} : vector<16x16xf32>, vector<16x16xf32>, vector<16x16xf32> -> vector<16x16xf32>
    %cst_14 = arith.constant 2.500000e-01 : f32
    %18 = vector.broadcast %cst_14 : f32 to vector<16x16xf32>
    %19 = arith.mulf %17, %18 : vector<16x16xf32>
    %20 = arith.addf %19, %4 : vector<16x16xf32>
    %cst_15 = arith.constant dense<0xFF800000> : vector<16xf32>
    %21 = vector.multi_reduction <maximumf>, %20, %cst_15 [1] : vector<16x16xf32> to vector<16xf32>
    %22 = vector.shape_cast %21 : vector<16xf32> to vector<16x1xf32>
    %23 = vector.broadcast %22 : vector<16x1xf32> to vector<16x16xf32>
    %24 = arith.subf %20, %23 : vector<16x16xf32>
    %25 = math.exp %24 : vector<16x16xf32>
    %cst_16 = arith.constant dense<0.000000e+00> : vector<16xf32>
    %26 = vector.multi_reduction <add>, %25, %cst_16 [1] : vector<16x16xf32> to vector<16xf32>
    %27 = vector.shape_cast %26 : vector<16xf32> to vector<16x1xf32>
    %28 = tpu.reciprocal %27 {approx = true} : vector<16x1xf32> -> vector<16x1xf32>
    %29 = vector.broadcast %28 : vector<16x1xf32> to vector<16x16xf32>
    %30 = arith.mulf %25, %29 : vector<16x16xf32>
    %cst_17 = arith.constant dense<0.000000e+00> : vector<16x16xf32>
    %31 = tpu.matmul %30, %16, %cst_17 {dimension_numbers = #tpu.dot_dimension_numbers<[1], [0], [0], [1], [0, 0, 1, 1], [], []>} : vector<16x16xf32>, vector<16x16xf32>, vector<16x16xf32> -> vector<16x16xf32>
    %32 = vector.extract_strided_slice %13 {offsets = [0, 0], sizes = [16, 32], strides = [1, 1]} : vector<32x32xf32> to vector<16x32xf32>
    %cst_18 = arith.constant dense<0.000000e+00> : vector<16x32xf32>
    %33 = tpu.matmul %31, %32, %cst_18 {dimension_numbers = #tpu.dot_dimension_numbers<[1], [0], [0], [1], [0, 0, 1, 1], [], []>} : vector<16x16xf32>, vector<16x32xf32>, vector<16x32xf32> -> vector<16x32xf32>
    %34 = vector.extract_strided_slice %11 {offsets = [0, 16], sizes = [16, 16], strides = [1, 1]} : vector<16x96xf32> to vector<16x16xf32>
    %35 = vector.extract_strided_slice %11 {offsets = [0, 48], sizes = [16, 16], strides = [1, 1]} : vector<16x96xf32> to vector<16x16xf32>
    %36 = vector.extract_strided_slice %11 {offsets = [0, 80], sizes = [16, 16], strides = [1, 1]} : vector<16x96xf32> to vector<16x16xf32>
    %cst_19 = arith.constant dense<0.000000e+00> : vector<16x16xf32>
    %37 = tpu.matmul %34, %35, %cst_19 {dimension_numbers = #tpu.dot_dimension_numbers<[1], [1], [0], [0], [0, 0, 1, 0], [], []>} : vector<16x16xf32>, vector<16x16xf32>, vector<16x16xf32> -> vector<16x16xf32>
    %cst_20 = arith.constant 2.500000e-01 : f32
    %38 = vector.broadcast %cst_20 : f32 to vector<16x16xf32>
    %39 = arith.mulf %37, %38 : vector<16x16xf32>
    %40 = arith.addf %39, %4 : vector<16x16xf32>
    %cst_21 = arith.constant dense<0xFF800000> : vector<16xf32>
    %41 = vector.multi_reduction <maximumf>, %40, %cst_21 [1] : vector<16x16xf32> to vector<16xf32>
    %42 = vector.shape_cast %41 : vector<16xf32> to vector<16x1xf32>
    %43 = vector.broadcast %42 : vector<16x1xf32> to vector<16x16xf32>
    %44 = arith.subf %40, %43 : vector<16x16xf32>
    %45 = math.exp %44 : vector<16x16xf32>
    %cst_22 = arith.constant dense<0.000000e+00> : vector<16xf32>
    %46 = vector.multi_reduction <add>, %45, %cst_22 [1] : vector<16x16xf32> to vector<16xf32>
    %47 = vector.shape_cast %46 : vector<16xf32> to vector<16x1xf32>
    %48 = tpu.reciprocal %47 {approx = true} : vector<16x1xf32> -> vector<16x1xf32>
    %49 = vector.broadcast %48 : vector<16x1xf32> to vector<16x16xf32>
    %50 = arith.mulf %45, %49 : vector<16x16xf32>
    %cst_23 = arith.constant dense<0.000000e+00> : vector<16x16xf32>
    %51 = tpu.matmul %50, %36, %cst_23 {dimension_numbers = #tpu.dot_dimension_numbers<[1], [0], [0], [1], [0, 0, 1, 1], [], []>} : vector<16x16xf32>, vector<16x16xf32>, vector<16x16xf32> -> vector<16x16xf32>
    %52 = vector.extract_strided_slice %13 {offsets = [16, 0], sizes = [16, 32], strides = [1, 1]} : vector<32x32xf32> to vector<16x32xf32>
    %cst_24 = arith.constant dense<0.000000e+00> : vector<16x32xf32>
    %53 = tpu.matmul %51, %52, %cst_24 {dimension_numbers = #tpu.dot_dimension_numbers<[1], [0], [0], [1], [0, 0, 1, 1], [], []>} : vector<16x16xf32>, vector<16x32xf32>, vector<16x32xf32> -> vector<16x32xf32>
    %54 = arith.addf %33, %53 : vector<16x32xf32>
    %c0_25 = arith.constant 0 : index
    %c0_26 = arith.constant 0 : index
    %c0_27 = arith.constant 0 : index
    %55 = vector.load %arg8[%c0_25, %c0_26, %c0_27] : memref<1x1x32xf32, #tpu.memory_space<vmem>>, vector<1x1x32xf32>
    %56 = vector.shape_cast %55 : vector<1x1x32xf32> to vector<1x32xf32>
    %57 = vector.broadcast %56 : vector<1x32xf32> to vector<16x32xf32>
    %58 = arith.addf %54, %57 : vector<16x32xf32>
    %59 = arith.addf %58, %3 : vector<16x32xf32>
    %c0_28 = arith.constant 0 : index
    %c0_29 = arith.constant 0 : index
    %c0_30 = arith.constant 0 : index
    %60 = vector.load %arg9[%c0_28, %c0_29, %c0_30] : memref<1x1x32xf32, #tpu.memory_space<vmem>>, vector<1x1x32xf32>
    %61 = vector.shape_cast %60 : vector<1x1x32xf32> to vector<1x32xf32>
    %c0_31 = arith.constant 0 : index
    %c0_32 = arith.constant 0 : index
    %c0_33 = arith.constant 0 : index
    %62 = vector.load %arg10[%c0_31, %c0_32, %c0_33] : memref<1x1x32xf32, #tpu.memory_space<vmem>>, vector<1x1x32xf32>
    %63 = vector.shape_cast %62 : vector<1x1x32xf32> to vector<1x32xf32>
    %cst_34 = arith.constant dense<0.000000e+00> : vector<16xf32>
    %64 = vector.multi_reduction <add>, %59, %cst_34 [1] : vector<16x32xf32> to vector<16xf32>
    %65 = vector.shape_cast %64 : vector<16xf32> to vector<16x1xf32>
    %cst_35 = arith.constant 3.200000e+01 : f32
    %66 = vector.broadcast %cst_35 : f32 to vector<16x1xf32>
    %67 = arith.divf %65, %66 : vector<16x1xf32>
    %68 = vector.broadcast %67 : vector<16x1xf32> to vector<16x32xf32>
    %69 = arith.subf %59, %68 : vector<16x32xf32>
    %70 = vector.broadcast %67 : vector<16x1xf32> to vector<16x32xf32>
    %71 = arith.subf %59, %70 : vector<16x32xf32>
    %72 = arith.mulf %69, %71 : vector<16x32xf32>
    %cst_36 = arith.constant dense<0.000000e+00> : vector<16xf32>
    %73 = vector.multi_reduction <add>, %72, %cst_36 [1] : vector<16x32xf32> to vector<16xf32>
    %74 = vector.shape_cast %73 : vector<16xf32> to vector<16x1xf32>
    %cst_37 = arith.constant 3.200000e+01 : f32
    %75 = vector.broadcast %cst_37 : f32 to vector<16x1xf32>
    %76 = arith.divf %74, %75 : vector<16x1xf32>
    %77 = vector.broadcast %67 : vector<16x1xf32> to vector<16x32xf32>
    %78 = arith.subf %59, %77 : vector<16x32xf32>
    %cst_38 = arith.constant 9.99999996E-13 : f32
    %79 = vector.broadcast %cst_38 : f32 to vector<16x1xf32>
    %80 = arith.addf %76, %79 : vector<16x1xf32>
    %81 = math.rsqrt %80 : vector<16x1xf32>
    %82 = vector.broadcast %81 : vector<16x1xf32> to vector<16x32xf32>
    %83 = arith.mulf %78, %82 : vector<16x32xf32>
    %84 = vector.broadcast %61 : vector<1x32xf32> to vector<16x32xf32>
    %85 = arith.mulf %83, %84 : vector<16x32xf32>
    %86 = vector.broadcast %63 : vector<1x32xf32> to vector<16x32xf32>
    %87 = arith.addf %85, %86 : vector<16x32xf32>
    %c0_39 = arith.constant 0 : index
    %c0_40 = arith.constant 0 : index
    %c0_41 = arith.constant 0 : index
    %88 = vector.load %arg11[%c0_39, %c0_40, %c0_41] : memref<1x32x64xf32, #tpu.memory_space<vmem>>, vector<1x32x64xf32>
    %89 = vector.shape_cast %88 : vector<1x32x64xf32> to vector<32x64xf32>
    %cst_42 = arith.constant dense<0.000000e+00> : vector<16x64xf32>
    %90 = tpu.matmul %87, %89, %cst_42 {dimension_numbers = #tpu.dot_dimension_numbers<[1], [0], [0], [1], [0, 0, 1, 1], [], []>} : vector<16x32xf32>, vector<32x64xf32>, vector<16x64xf32> -> vector<16x64xf32>
    %c0_43 = arith.constant 0 : index
    %c0_44 = arith.constant 0 : index
    %c0_45 = arith.constant 0 : index
    %91 = vector.load %arg12[%c0_43, %c0_44, %c0_45] : memref<1x1x64xf32, #tpu.memory_space<vmem>>, vector<1x1x64xf32>
    %92 = vector.shape_cast %91 : vector<1x1x64xf32> to vector<1x64xf32>
    %93 = vector.broadcast %92 : vector<1x64xf32> to vector<16x64xf32>
    %94 = arith.addf %90, %93 : vector<16x64xf32>
    %cst_46 = arith.constant 5.000000e-01 : f32
    %95 = vector.broadcast %cst_46 : f32 to vector<16x64xf32>
    %96 = arith.mulf %95, %94 : vector<16x64xf32>
    %cst_47 = arith.constant 4.471500e-02 : f32
    %97 = vector.broadcast %cst_47 : f32 to vector<16x64xf32>
    %98 = arith.mulf %97, %94 : vector<16x64xf32>
    %99 = arith.mulf %98, %94 : vector<16x64xf32>
    %100 = arith.mulf %99, %94 : vector<16x64xf32>
    %101 = arith.addf %94, %100 : vector<16x64xf32>
    %cst_48 = arith.constant 0.797884583 : f32
    %102 = vector.broadcast %cst_48 : f32 to vector<16x64xf32>
    %103 = arith.mulf %102, %101 : vector<16x64xf32>
    %104 = math.tanh %103 : vector<16x64xf32>
    %cst_49 = arith.constant 1.000000e+00 : f32
    %105 = vector.broadcast %cst_49 : f32 to vector<16x64xf32>
    %106 = arith.addf %105, %104 : vector<16x64xf32>
    %107 = arith.mulf %96, %106 : vector<16x64xf32>
    %c0_50 = arith.constant 0 : index
    %c0_51 = arith.constant 0 : index
    %c0_52 = arith.constant 0 : index
    %108 = vector.load %arg13[%c0_50, %c0_51, %c0_52] : memref<1x64x32xf32, #tpu.memory_space<vmem>>, vector<1x64x32xf32>
    %109 = vector.shape_cast %108 : vector<1x64x32xf32> to vector<64x32xf32>
    %cst_53 = arith.constant dense<0.000000e+00> : vector<16x32xf32>
    %110 = tpu.matmul %107, %109, %cst_53 {dimension_numbers = #tpu.dot_dimension_numbers<[1], [0], [0], [1], [0, 0, 1, 1], [], []>} : vector<16x64xf32>, vector<64x32xf32>, vector<16x32xf32> -> vector<16x32xf32>
    %c0_54 = arith.constant 0 : index
    %c0_55 = arith.constant 0 : index
    %c0_56 = arith.constant 0 : index
    %111 = vector.load %arg14[%c0_54, %c0_55, %c0_56] : memref<1x1x32xf32, #tpu.memory_space<vmem>>, vector<1x1x32xf32>
    %112 = vector.shape_cast %111 : vector<1x1x32xf32> to vector<1x32xf32>
    %113 = vector.broadcast %112 : vector<1x32xf32> to vector<16x32xf32>
    %114 = arith.addf %110, %113 : vector<16x32xf32>
    %115 = arith.addf %114, %87 : vector<16x32xf32>
    %c0_57 = arith.constant 0 : index
    %c0_58 = arith.constant 0 : index
    %c0_59 = arith.constant 0 : index
    %116 = vector.load %arg15[%c0_57, %c0_58, %c0_59] : memref<1x1x32xf32, #tpu.memory_space<vmem>>, vector<1x1x32xf32>
    %117 = vector.shape_cast %116 : vector<1x1x32xf32> to vector<1x32xf32>
    %c0_60 = arith.constant 0 : index
    %c0_61 = arith.constant 0 : index
    %c0_62 = arith.constant 0 : index
    %118 = vector.load %arg16[%c0_60, %c0_61, %c0_62] : memref<1x1x32xf32, #tpu.memory_space<vmem>>, vector<1x1x32xf32>
    %119 = vector.shape_cast %118 : vector<1x1x32xf32> to vector<1x32xf32>
    %cst_63 = arith.constant dense<0.000000e+00> : vector<16xf32>
    %120 = vector.multi_reduction <add>, %115, %cst_63 [1] : vector<16x32xf32> to vector<16xf32>
    %121 = vector.shape_cast %120 : vector<16xf32> to vector<16x1xf32>
    %cst_64 = arith.constant 3.200000e+01 : f32
    %122 = vector.broadcast %cst_64 : f32 to vector<16x1xf32>
    %123 = arith.divf %121, %122 : vector<16x1xf32>
    %124 = vector.broadcast %123 : vector<16x1xf32> to vector<16x32xf32>
    %125 = arith.subf %115, %124 : vector<16x32xf32>
    %126 = vector.broadcast %123 : vector<16x1xf32> to vector<16x32xf32>
    %127 = arith.subf %115, %126 : vector<16x32xf32>
    %128 = arith.mulf %125, %127 : vector<16x32xf32>
    %cst_65 = arith.constant dense<0.000000e+00> : vector<16xf32>
    %129 = vector.multi_reduction <add>, %128, %cst_65 [1] : vector<16x32xf32> to vector<16xf32>
    %130 = vector.shape_cast %129 : vector<16xf32> to vector<16x1xf32>
    %cst_66 = arith.constant 3.200000e+01 : f32
    %131 = vector.broadcast %cst_66 : f32 to vector<16x1xf32>
    %132 = arith.divf %130, %131 : vector<16x1xf32>
    %133 = vector.broadcast %123 : vector<16x1xf32> to vector<16x32xf32>
    %134 = arith.subf %115, %133 : vector<16x32xf32>
    %cst_67 = arith.constant 9.99999996E-13 : f32
    %135 = vector.broadcast %cst_67 : f32 to vector<16x1xf32>
    %136 = arith.addf %132, %135 : vector<16x1xf32>
    %137 = math.rsqrt %136 : vector<16x1xf32>
    %138 = vector.broadcast %137 : vector<16x1xf32> to vector<16x32xf32>
    %139 = arith.mulf %134, %138 : vector<16x32xf32>
    %140 = vector.broadcast %117 : vector<1x32xf32> to vector<16x32xf32>
    %141 = arith.mulf %139, %140 : vector<16x32xf32>
    %142 = vector.broadcast %119 : vector<1x32xf32> to vector<16x32xf32>
    %143 = arith.addf %141, %142 : vector<16x32xf32>
    %c0_68 = arith.constant 0 : index
    %c0_69 = arith.constant 0 : index
    %144 = vector.load %arg18[%c0_68, %c0_69] : memref<16x32xf32, #tpu.memory_space<vmem>>, vector<16x32xf32>
    tpu.vector_store %arg18[%c0_68, %c0_69], %143 {strides = array<i32>} : memref<16x32xf32, #tpu.memory_space<vmem>>, vector<16x32xf32>,
    %c0_70 = arith.constant 0 : index
    %c0_71 = arith.constant 0 : index
    %145 = vector.load %arg17[%c0_70, %c0_71] : memref<16x32xf32, #tpu.memory_space<vmem>>, vector<16x32xf32>
    tpu.vector_store %arg17[%c0_70, %c0_71], %143 {strides = array<i32>} : memref<16x32xf32, #tpu.memory_space<vmem>>, vector<16x32xf32>,
    return
  }
  func.func @transform_0(%arg0: i32) -> (i32, i32) {
    %c0_i32 = arith.constant 0 : i32
    %c0_i32_0 = arith.constant 0 : i32
    %c0_i32_1 = arith.constant 0 : i32
    return %c0_i32, %c0_i32_0 : i32, i32
  }
  func.func @transform_1(%arg0: i32) -> (i32, i32) {
    %c0_i32 = arith.constant 0 : i32
    %c0_i32_0 = arith.constant 0 : i32
    %c0_i32_1 = arith.constant 0 : i32
    return %c0_i32, %c0_i32_0 : i32, i32
  }
  func.func @transform_2(%arg0: i32) -> (i32, i32) {
    %c0_i32 = arith.constant 0 : i32
    %c0_i32_0 = arith.constant 0 : i32
    %c0_i32_1 = arith.constant 0 : i32
    return %c0_i32, %c0_i32_0 : i32, i32
  }
  func.func @transform_3(%arg0: i32) -> (i32, i32) {
    %c0_i32 = arith.constant 0 : i32
    %c0_i32_0 = arith.constant 0 : i32
    %c0_i32_1 = arith.constant 0 : i32
    return %c0_i32, %c0_i32_0 : i32, i32
  }
  func.func @transform_4(%arg0: i32) -> (i32, i32, i32) {
    %c0_i32 = arith.constant 0 : i32
    %c0_i32_0 = arith.constant 0 : i32
    %c0_i32_1 = arith.constant 0 : i32
    return %arg0, %c0_i32, %c0_i32_0 : i32, i32, i32
  }
  func.func @transform_5(%arg0: i32) -> (i32, i32, i32) {
    %c0_i32 = arith.constant 0 : i32
    %c0_i32_0 = arith.constant 0 : i32
    %c0_i32_1 = arith.constant 0 : i32
    return %arg0, %c0_i32, %c0_i32_0 : i32, i32, i32
  }
  func.func @transform_6(%arg0: i32) -> (i32, i32, i32) {
    %c0_i32 = arith.constant 0 : i32
    %c0_i32_0 = arith.constant 0 : i32
    %c0_i32_1 = arith.constant 0 : i32
    return %arg0, %c0_i32, %c0_i32_0 : i32, i32, i32
  }
  func.func @transform_7(%arg0: i32) -> (i32, i32, i32) {
    %c0_i32 = arith.constant 0 : i32
    %c0_i32_0 = arith.constant 0 : i32
    %c0_i32_1 = arith.constant 0 : i32
    return %arg0, %c0_i32, %c0_i32_0 : i32, i32, i32
  }
  func.func @transform_8(%arg0: i32) -> (i32, i32, i32) {
    %c0_i32 = arith.constant 0 : i32
    %c0_i32_0 = arith.constant 0 : i32
    %c0_i32_1 = arith.constant 0 : i32
    return %arg0, %c0_i32, %c0_i32_0 : i32, i32, i32
  }
  func.func @transform_9(%arg0: i32) -> (i32, i32, i32) {
    %c0_i32 = arith.constant 0 : i32
    %c0_i32_0 = arith.constant 0 : i32
    %c0_i32_1 = arith.constant 0 : i32
    return %arg0, %c0_i32, %c0_i32_0 : i32, i32, i32
  }
  func.func @transform_10(%arg0: i32) -> (i32, i32, i32) {
    %c0_i32 = arith.constant 0 : i32
    %c0_i32_0 = arith.constant 0 : i32
    %c0_i32_1 = arith.constant 0 : i32
    return %arg0, %c0_i32, %c0_i32_0 : i32, i32, i32
  }
  func.func @transform_11(%arg0: i32) -> (i32, i32, i32) {
    %c0_i32 = arith.constant 0 : i32
    %c0_i32_0 = arith.constant 0 : i32
    %c0_i32_1 = arith.constant 0 : i32
    return %arg0, %c0_i32, %c0_i32_0 : i32, i32, i32
  }
  func.func @transform_12(%arg0: i32) -> (i32, i32, i32) {
    %c0_i32 = arith.constant 0 : i32
    %c0_i32_0 = arith.constant 0 : i32
    %c0_i32_1 = arith.constant 0 : i32
    return %arg0, %c0_i32, %c0_i32_0 : i32, i32, i32
  }
  func.func @transform_13(%arg0: i32) -> (i32, i32, i32) {
    %c0_i32 = arith.constant 0 : i32
    %c0_i32_0 = arith.constant 0 : i32
    %c0_i32_1 = arith.constant 0 : i32
    return %arg0, %c0_i32, %c0_i32_0 : i32, i32, i32
  }
  func.func @transform_14(%arg0: i32) -> (i32, i32, i32) {
    %c0_i32 = arith.constant 0 : i32
    %c0_i32_0 = arith.constant 0 : i32
    %c0_i32_1 = arith.constant 0 : i32
    return %arg0, %c0_i32, %c0_i32_0 : i32, i32, i32
  }
  func.func @transform_15(%arg0: i32) -> (i32, i32, i32) {
    %c0_i32 = arith.constant 0 : i32
    %c0_i32_0 = arith.constant 0 : i32
    %c0_i32_1 = arith.constant 0 : i32
    return %arg0, %c0_i32, %c0_i32_0 : i32, i32, i32
  }
  func.func @transform_16(%arg0: i32) -> (i32, i32) {
    %c0_i32 = arith.constant 0 : i32
    %c0_i32_0 = arith.constant 0 : i32
    %c0_i32_1 = arith.constant 0 : i32
    return %c0_i32, %c0_i32_0 : i32, i32
  }
}

module attributes {stable_mosaic.version = 11 : i64} {
  func.func @_head_kernel(%arg0: i32, %arg1: memref<2x32xf32, #tpu.memory_space<vmem>>, %arg2: memref<32x32xf32, #tpu.memory_space<vmem>>, %arg3: memref<1x32xf32, #tpu.memory_space<vmem>>, %arg4: memref<32x2xf32, #tpu.memory_space<vmem>>, %arg5: memref<1x2xf32, #tpu.memory_space<vmem>>, %arg6: memref<2x2xf32, #tpu.memory_space<vmem>>, %arg7: memref<1x1xf32, #tpu.memory_space<vmem>>, %arg8: memref<2x2xf32, #tpu.memory_space<vmem>>, %arg9: memref<2x2xf32, #tpu.memory_space<vmem>>) attributes {dimension_semantics = [#tpu.dimension_semantics<arbitrary>], iteration_bounds = array<i64: 1>, scalar_prefetch = 0 : i64, scratch_operands = 0 : i64, tpu.core_type = #tpu.core_type<tc>, window_params = [{pipeline_mode = #tpu.pipeline_mode<synchronous>, transform_indices = @transform_0, window_bounds = array<i64: 2, 32>}, {pipeline_mode = #tpu.pipeline_mode<synchronous>, transform_indices = @transform_1, window_bounds = array<i64: 32, 32>}, {pipeline_mode = #tpu.pipeline_mode<synchronous>, transform_indices = @transform_2, window_bounds = array<i64: 1, 32>}, {pipeline_mode = #tpu.pipeline_mode<synchronous>, transform_indices = @transform_3, window_bounds = array<i64: 32, 2>}, {pipeline_mode = #tpu.pipeline_mode<synchronous>, transform_indices = @transform_4, window_bounds = array<i64: 1, 2>}, {pipeline_mode = #tpu.pipeline_mode<synchronous>, transform_indices = @transform_5, window_bounds = array<i64: 2, 2>}, {pipeline_mode = #tpu.pipeline_mode<synchronous>, transform_indices = @transform_6, window_bounds = array<i64: 1, 1>}, {pipeline_mode = #tpu.pipeline_mode<synchronous>, transform_indices = @transform_7, window_bounds = array<i64: 2, 2>}, {pipeline_mode = #tpu.pipeline_mode<synchronous>, transform_indices = @transform_8, window_bounds = array<i64: 2, 2>}]} {
    %c0 = arith.constant 0 : index
    %c0_0 = arith.constant 0 : index
    %0 = vector.load %arg1[%c0, %c0_0] : memref<2x32xf32, #tpu.memory_space<vmem>>, vector<2x32xf32>
    %c0_1 = arith.constant 0 : index
    %c0_2 = arith.constant 0 : index
    %1 = vector.load %arg2[%c0_1, %c0_2] : memref<32x32xf32, #tpu.memory_space<vmem>>, vector<32x32xf32>
    %cst = arith.constant dense<0.000000e+00> : vector<2x32xf32>
    %2 = tpu.matmul %0, %1, %cst {dimension_numbers = #tpu.dot_dimension_numbers<[1], [0], [0], [1], [0, 0, 1, 1], [], []>} : vector<2x32xf32>, vector<32x32xf32>, vector<2x32xf32> -> vector<2x32xf32>
    %c0_3 = arith.constant 0 : index
    %c0_4 = arith.constant 0 : index
    %3 = vector.load %arg3[%c0_3, %c0_4] : memref<1x32xf32, #tpu.memory_space<vmem>>, vector<1x32xf32>
    %4 = vector.broadcast %3 : vector<1x32xf32> to vector<2x32xf32>
    %5 = arith.addf %2, %4 : vector<2x32xf32>
    %6 = math.tanh %5 : vector<2x32xf32>
    %c0_5 = arith.constant 0 : index
    %c0_6 = arith.constant 0 : index
    %7 = vector.load %arg4[%c0_5, %c0_6] : memref<32x2xf32, #tpu.memory_space<vmem>>, vector<32x2xf32>
    %cst_7 = arith.constant dense<0.000000e+00> : vector<2x2xf32>
    %8 = tpu.matmul %6, %7, %cst_7 {dimension_numbers = #tpu.dot_dimension_numbers<[1], [0], [0], [1], [0, 0, 1, 1], [], []>} : vector<2x32xf32>, vector<32x2xf32>, vector<2x2xf32> -> vector<2x2xf32>
    %c0_8 = arith.constant 0 : index
    %c0_9 = arith.constant 0 : index
    %9 = vector.load %arg5[%c0_8, %c0_9] : memref<1x2xf32, #tpu.memory_space<vmem>>, vector<1x2xf32>
    %10 = vector.broadcast %9 : vector<1x2xf32> to vector<2x2xf32>
    %11 = arith.addf %8, %10 : vector<2x2xf32>
    %c0_10 = arith.constant 0 : index
    %c0_11 = arith.constant 0 : index
    %12 = vector.load %arg8[%c0_10, %c0_11] : memref<2x2xf32, #tpu.memory_space<vmem>>, vector<2x2xf32>
    tpu.vector_store %arg8[%c0_10, %c0_11], %11 {strides = array<i32>} : memref<2x2xf32, #tpu.memory_space<vmem>>, vector<2x2xf32>,
    %cst_12 = arith.constant dense<0xFF800000> : vector<2xf32>
    %13 = vector.multi_reduction <maximumf>, %11, %cst_12 [1] : vector<2x2xf32> to vector<2xf32>
    %14 = vector.shape_cast %13 : vector<2xf32> to vector<2x1xf32>
    %15 = vector.broadcast %14 : vector<2x1xf32> to vector<2x2xf32>
    %16 = arith.subf %11, %15 : vector<2x2xf32>
    %17 = math.exp %16 : vector<2x2xf32>
    %cst_13 = arith.constant dense<0.000000e+00> : vector<2xf32>
    %18 = vector.multi_reduction <add>, %17, %cst_13 [1] : vector<2x2xf32> to vector<2xf32>
    %19 = vector.shape_cast %18 : vector<2xf32> to vector<2x1xf32>
    %20 = tpu.reciprocal %19 {approx = true} : vector<2x1xf32> -> vector<2x1xf32>
    %21 = vector.broadcast %20 : vector<2x1xf32> to vector<2x2xf32>
    %22 = arith.mulf %17, %21 : vector<2x2xf32>
    %c0_14 = arith.constant 0 : index
    %c0_15 = arith.constant 0 : index
    %23 = vector.load %arg9[%c0_14, %c0_15] : memref<2x2xf32, #tpu.memory_space<vmem>>, vector<2x2xf32>
    tpu.vector_store %arg9[%c0_14, %c0_15], %22 {strides = array<i32>} : memref<2x2xf32, #tpu.memory_space<vmem>>, vector<2x2xf32>,
    %24 = vector.broadcast %14 : vector<2x1xf32> to vector<2x2xf32>
    %25 = arith.subf %11, %24 : vector<2x2xf32>
    %26 = math.log %19 : vector<2x1xf32>
    %27 = vector.broadcast %26 : vector<2x1xf32> to vector<2x2xf32>
    %28 = arith.subf %25, %27 : vector<2x2xf32>
    %c0_16 = arith.constant 0 : index
    %c0_17 = arith.constant 0 : index
    %29 = vector.load %arg6[%c0_16, %c0_17] : memref<2x2xf32, #tpu.memory_space<vmem>>, vector<2x2xf32>
    %30 = arith.mulf %29, %28 : vector<2x2xf32>
    %cst_18 = arith.constant dense<0.000000e+00> : vector<2xf32>
    %31 = vector.multi_reduction <add>, %30, %cst_18 [1] : vector<2x2xf32> to vector<2xf32>
    %32 = vector.shape_cast %31 : vector<2xf32> to vector<2x1xf32>
    %cst_19 = arith.constant 0.000000e+00 : f32
    %33 = vector.broadcast %cst_19 : f32 to vector<2x1xf32>
    %34 = arith.subf %33, %32 : vector<2x1xf32>
    %cst_20 = arith.constant dense<0.000000e+00> : vector<1xf32>
    %35 = vector.multi_reduction <add>, %34, %cst_20 [0] : vector<2x1xf32> to vector<1xf32>
    %36 = vector.shape_cast %35 : vector<1xf32> to vector<1x1xf32>
    %cst_21 = arith.constant 5.000000e-01 : f32
    %37 = vector.broadcast %cst_21 : f32 to vector<1x1xf32>
    %38 = arith.mulf %36, %37 : vector<1x1xf32>
    %c0_22 = arith.constant 0 : index
    %c0_23 = arith.constant 0 : index
    %39 = vector.load %arg7[%c0_22, %c0_23] : memref<1x1xf32, #tpu.memory_space<vmem>>, vector<1x1xf32>
    tpu.vector_store %arg7[%c0_22, %c0_23], %38 {strides = array<i32>} : memref<1x1xf32, #tpu.memory_space<vmem>>, vector<1x1xf32>,
    return
  }
  func.func @transform_0(%arg0: i32) -> (i32, i32) {
    %c0_i32 = arith.constant 0 : i32
    %c0_i32_0 = arith.constant 0 : i32
    %c0_i32_1 = arith.constant 0 : i32
    return %c0_i32, %c0_i32_0 : i32, i32
  }
  func.func @transform_1(%arg0: i32) -> (i32, i32) {
    %c0_i32 = arith.constant 0 : i32
    %c0_i32_0 = arith.constant 0 : i32
    %c0_i32_1 = arith.constant 0 : i32
    return %c0_i32, %c0_i32_0 : i32, i32
  }
  func.func @transform_2(%arg0: i32) -> (i32, i32) {
    %c0_i32 = arith.constant 0 : i32
    %c0_i32_0 = arith.constant 0 : i32
    %c0_i32_1 = arith.constant 0 : i32
    return %c0_i32, %c0_i32_0 : i32, i32
  }
  func.func @transform_3(%arg0: i32) -> (i32, i32) {
    %c0_i32 = arith.constant 0 : i32
    %c0_i32_0 = arith.constant 0 : i32
    %c0_i32_1 = arith.constant 0 : i32
    return %c0_i32, %c0_i32_0 : i32, i32
  }
  func.func @transform_4(%arg0: i32) -> (i32, i32) {
    %c0_i32 = arith.constant 0 : i32
    %c0_i32_0 = arith.constant 0 : i32
    %c0_i32_1 = arith.constant 0 : i32
    return %c0_i32, %c0_i32_0 : i32, i32
  }
  func.func @transform_5(%arg0: i32) -> (i32, i32) {
    %c0_i32 = arith.constant 0 : i32
    %c0_i32_0 = arith.constant 0 : i32
    %c0_i32_1 = arith.constant 0 : i32
    return %c0_i32, %c0_i32_0 : i32, i32
  }
  func.func @transform_6(%arg0: i32) -> (i32, i32) {
    %c0_i32 = arith.constant 0 : i32
    %c0_i32_0 = arith.constant 0 : i32
    %c0_i32_1 = arith.constant 0 : i32
    return %c0_i32, %c0_i32_0 : i32, i32
  }
  func.func @transform_7(%arg0: i32) -> (i32, i32) {
    %c0_i32 = arith.constant 0 : i32
    %c0_i32_0 = arith.constant 0 : i32
    %c0_i32_1 = arith.constant 0 : i32
    return %c0_i32, %c0_i32_0 : i32, i32
  }
  func.func @transform_8(%arg0: i32) -> (i32, i32) {
    %c0_i32 = arith.constant 0 : i32
    %c0_i32_0 = arith.constant 0 : i32
    %c0_i32_1 = arith.constant 0 : i32
    return %c0_i32, %c0_i32_0 : i32, i32
  }
}

</mosaic_0001>

<llo_original>
// kernel: mul.8
$region0: #{mul.8}
  %s0 = inlined_call_operand.vmem [shape: f32[2,8], index: 0, kind: input, shape index: {}]
  %s1 = inlined_call_operand.vmem [shape: f32[16], index: 1, kind: output, shape index: {}]
  $region1: #{mul.8} parent=0
    #allocation0 [shape = 'u8[4096]{0}', space=vmem, size = 0x1000, scoped, tag = 'scoped mem for output reshape']
    #allocation1 [shape = 'u8[4096]{0}', space=vmem, size = 0x1000, scoped, tag = 'scoped mem for input reshape']
    %s3 = ssub.s32 4, 1
    %v4 = vld [vmem:[%s0] sm:%s3]
    %5 = vst [vmem:[#allocation1] sm:%s3] %v4
    %v6 = vld [vmem:[#allocation1] sm:$0x1]
    %vm7 = vcmask 64512
    %8 = vst.msk [vmem:[#allocation0] sm:$0x1] %vm7, %v6
    %s9 = scalar_lea.vmem [#allocation1], 1
    %v10 = vld [vmem:[%s9] sm:$0x1]
    %11 = vrot.lane.b32.xlu0 %v10, 8
    %v12 = vpop.permute.xlu0 %11
    %vm13 = vcmask 130112
    %14 = vst.msk [vmem:[#allocation0] sm:$0x1] %vm13, %v12
    %s16 = ssub.s32 2, 1
    %v17 = vld [vmem:[#allocation0] sm:%s16]
    %s19 = ssub.s32 2, 1
    %20 = vst [vmem:[%s1] sm:%s19] %v17

// kernel: bert_model_train_forward.3
$region0: #{bert_model_train_forward.3}
  #allocation0 [shape = 'u32[]', space=smem, size = 0x4, offset = 0x4, fixed_abs, tag = 'smem constant byte address 0x4 - core index']
  #allocation1 [shape = 'u32[72,128]{1,0:T(1,128)}', space=vmem, size = 0x9000, scoped, tag = 'internal scratch']
  %s0 = inlined_call_operand.vmem [shape: f32[2,32], index: 0, kind: input, shape index: {}]
  %s1 = inlined_call_operand.vmem [shape: f32[32,32], index: 1, kind: input, shape index: {}]
  %s2 = inlined_call_operand.vmem [shape: f32[1,32], index: 2, kind: input, shape index: {}]
  %s3 = inlined_call_operand.vmem [shape: f32[32,2], index: 3, kind: input, shape index: {}]
  %s4 = inlined_call_operand.vmem [shape: f32[1,2], index: 4, kind: input, shape index: {}]
  %s5 = inlined_call_operand.vmem [shape: f32[2,2], index: 5, kind: input, shape index: {}]
  %s6 = inlined_call_operand.hbm [shape: f32[1,1], index: 6, kind: output, shape index: {0}]
  %s7 = inlined_call_operand.hbm [shape: f32[2,2], index: 7, kind: output, shape index: {1}]
  %s8 = inlined_call_operand.hbm [shape: f32[2,2], index: 8, kind: output, shape index: {2}]
  %9 = xla_tuple %s6, %s7, %s8
  %s10 = sld [smem:[#allocation0]]
  $region50: #{bert_model_train_forward.3} parent=0
    _
  %s12 = ssub.s32 1, %s10
  %s13 = scalar_select 0, %s12, %s10
  $region1: #{bert_model_train_forward.3} parent=0
    #allocation2 [shape = 'u8[512]{0}', space=vmem, size = 0x400, scoped, tag = 'output window, operand 0, single buffered']
    #allocation3 [shape = 's32[1]{0}', space=sflag, size = 0x4, scoped, tag = 'scoped memory for bert_model_train_forward.3']
    #allocation4 [shape = 'u8[1024]{0}', space=vmem, size = 0x400, scoped, tag = 'output window, operand 1, single buffered']
    #allocation5 [shape = 's32[1]{0}', space=sflag, size = 0x4, scoped, tag = 'scoped memory for bert_model_train_forward.3']
    #allocation6 [shape = 'u8[1024]{0}', space=vmem, size = 0x400, scoped, tag = 'output window, operand 2, single buffered']
    %14 = vsyncpa [#allocation3], 0
    %15 = vsyncpa [#allocation5], 0
    // Predicated region
    $region2: #{bert_model_train_forward.3} parent=1 // pred_check
      _
    $region3: #{bert_model_train_forward.3} parent=1 // pred_check_branch
      %17 = sbr.rel (0) target = $region5
    $region4: #{bert_model_train_forward.3} parent=1 // pred_region
      _
    $region5: #{bert_model_train_forward.3} parent=1 // pred_fallthru
      _
    // Predicated region
    $region6: #{bert_model_train_forward.3} parent=1 // pred_check
      _
    $region7: #{bert_model_train_forward.3} parent=1 // pred_check_branch
      %19 = sbr.rel (0) target = $region9
    $region8: #{bert_model_train_forward.3} parent=1 // pred_region
      _
    $region9: #{bert_model_train_forward.3} parent=1 // pred_fallthru
      _
    // Predicated region
    $region10: #{bert_model_train_forward.3} parent=1 // pred_check
      _
    $region11: #{bert_model_train_forward.3} parent=1 // pred_check_branch
      %21 = sbr.rel (0) target = $region13
    $region12: #{bert_model_train_forward.3} parent=1 // pred_region
      _
    $region13: #{bert_model_train_forward.3} parent=1 // pred_fallthru
      _
    // Predicated region
    $region14: #{bert_model_train_forward.3} parent=1 // pred_check
      _
    $region15: #{bert_model_train_forward.3} parent=1 // pred_check_branch
      %23 = sbr.rel (0) target = $region17
    $region16: #{bert_model_train_forward.3} parent=1 // pred_region
      _
    $region17: #{bert_model_train_forward.3} parent=1 // pred_fallthru
      _
    // Predicated region
    $region18: #{bert_model_train_forward.3} parent=1 // pred_check
      _
    $region19: #{bert_model_train_forward.3} parent=1 // pred_check_branch
      %25 = sbr.rel (0) target = $region21
    $region20: #{bert_model_train_forward.3} parent=1 // pred_region
      _
    $region21: #{bert_model_train_forward.3} parent=1 // pred_fallthru
      _
    // Predicated region
    $region22: #{bert_model_train_forward.3} parent=1 // pred_check
      _
    $region23: #{bert_model_train_forward.3} parent=1 // pred_check_branch
      %27 = sbr.rel (0) target = $region25
    $region24: #{bert_model_train_forward.3} parent=1 // pred_region
      _
    $region25: #{bert_model_train_forward.3} parent=1 // pred_fallthru
      _
    %v28 = vld [vmem:[%s0] sm:$0x3]
    %v29 = vld [vmem:[%s1] sm:$0xff]
    %v30 = vld [vmem:[%s1 + $0x8] sm:$0xff]
    %v31 = vld [vmem:[%s1 + $0x10] sm:$0xff]
    %v32 = vld [vmem:[%s1 + $0x18] sm:$0xff]
    %v33 = vld [vmem:[%s2] sm:$0x1]
    %v35 = vperm.slane %v33, 0
    %vm37 = vcmask 261120
    %v39 = vsel %vm37, %v28, 0
    %41 = vmatpush.msra.mxu0 0.0
    %42 = vmatpush.msra.mxu0 0.0
    %43 = vmatpush.msra.mxu0 0.0
    %44 = vmatpush.msra.mxu0 0.0
    %45 = vmatpush.msra.mxu0 0.0
    %46 = vmatpush.msra.mxu0 0.0
    %47 = vmatpush.msra.mxu0 0.0
    %48 = vmatpush.msra.mxu0 0.0
    %49 = vmatpush.msra.mxu0 0.0
    %50 = vmatpush.msra.mxu0 0.0
    %51 = vmatpush.msra.mxu0 0.0
    %52 = vmatpush.msra.mxu0 0.0
    %53 = vmatpush.msra.mxu0 %v32
    %54 = vmatpush.msra.mxu0 %v31
    %55 = vmatpush.msra.mxu0 %v30
    %56 = vmatpush.msra.mxu0 %v29
    %57 = vmatmul.f32.gmra.mxu0 %v39
    %v58 = vpop.f32.mrf.mxu0
    %v59 = vadd.f32 %v35, %v58
    %60 = vdwg.mxu0
    %v61 = vtanh.pop %v59
    %v62 = vld [vmem:[%s3] sm:$0xff]
    %v63 = vld [vmem:[%s3 + $0x8] sm:$0xff]
    %v64 = vld [vmem:[%s3 + $0x10] sm:$0xff]
    %v65 = vld [vmem:[%s3 + $0x18] sm:$0xff]
    %v66 = vld [vmem:[%s4] sm:$0x1]
    %v68 = vperm.slane %v66, 0
    %v71 = vsel %vm37, %v61, 0
    %73 = vmatpush.msra.mxu0 0.0
    %74 = vmatpush.msra.mxu0 0.0
    %75 = vmatpush.msra.mxu0 0.0
    %76 = vmatpush.msra.mxu0 0.0
    %77 = vmatpush.msra.mxu0 0.0
    %78 = vmatpush.msra.mxu0 0.0
    %79 = vmatpush.msra.mxu0 0.0
    %80 = vmatpush.msra.mxu0 0.0
    %81 = vmatpush.msra.mxu0 0.0
    %82 = vmatpush.msra.mxu0 0.0
    %83 = vmatpush.msra.mxu0 0.0
    %84 = vmatpush.msra.mxu0 0.0
    %85 = vmatpush.msra.mxu0 %v65
    %86 = vmatpush.msra.mxu0 %v64
    %87 = vmatpush.msra.mxu0 %v63
    %88 = vmatpush.msra.mxu0 %v62
    %89 = vmatmul.f32.gmra.mxu0 %v71
    %v90 = vpop.f32.mrf.mxu0
    %v91 = vadd.f32 %v68, %v90
    %92 = vdwg.mxu0
    %vm93 = vcmask 9216
    %94 = vst.msk [vmem:[#allocation4] sm:$0x3] %vm93, %v91
    %v95 = vsel %vm93, %v91, -inf
    %96 = vmax.xlane.f32.xlu0 %v95
    %v97 = vpop.xlane.xlu0 %96
    %v98 = vsub.f32 %v91, %v97
    %v99 = vmul.f32 %v98, 1.442695
    %v100 = vpow.pop %v99
    %v101 = vsel %vm93, %v100, 0.0
    %102 = vadd.xlane.f32.xlu0 %v101
    %v103 = vpop.xlane.xlu0 %102
    %v104 = vrcp.pop %v103
    %v105 = vmul.f32 %v100, %v104
    %106 = vst.msk [vmem:[#allocation6] sm:$0x3] %vm93, %v105
    %v107 = vlog2.pop %v103
    %v108 = vmul.f32 %v107, 0.6931472
    %v109 = vsub.f32 %v98, %v108
    %v110 = vld [vmem:[%s5] sm:$0x3]
    %v111 = vmul.f32 %v110, %v109
    %v112 = vsel %vm93, %v111, 0.0
    %113 = vadd.xlane.f32.xlu0 %v112
    %v114 = vpop.xlane.xlu0 %113
    %v115 = vsub.f32 0.0, %v114
    %vm116 = vcmask 1041408
    %v117 = vsel %vm116, %v115, 0.0
    %v118 = vrot.slane %v117, 4
    %v119 = vadd.f32 %v117, %v118
    %v120 = vrot.slane %v119, 2
    %v121 = vadd.f32 %v119, %v120
    %v122 = vrot.slane %v121, 1
    %v123 = vadd.f32 %v121, %v122
    %v124 = vmul.f32 %v123, 0.5
    %vm125 = vcmask 0
    %126 = vst.msk [vmem:[#allocation2] sm:$0x1] %vm125, %v124
    // Predicated region
    $region26: #{bert_model_train_forward.3} parent=1 // pred_check
      _
    $region27: #{bert_model_train_forward.3} parent=1 // pred_check_branch
      %128 = sbr.rel (0) target = $region29
    $region28: #{bert_model_train_forward.3} parent=1 // pred_region
      %130 = vsyncadd [#allocation3], 0
      %s132 = sshll.u32 [#allocation2], 4
      %s133 = int_to_ptr.vmem [resolvable:$true] %s132
      %s134 = sshll.u32 %s6, 4
      %s135 = int_to_ptr.hbm [resolvable:$true] %s134
      %137 = dma.vmem_to_hbm [thread:$0]  %s133, 16, %s135, [#allocation3]
    $region29: #{bert_model_train_forward.3} parent=1 // pred_fallthru
      _
    // Predicated region
    $region30: #{bert_model_train_forward.3} parent=1 // pred_check
      _
    $region31: #{bert_model_train_forward.3} parent=1 // pred_check_branch
      %139 = sbr.rel (0) target = $region33
    $region32: #{bert_model_train_forward.3} parent=1 // pred_region
      %141 = vsyncadd [#allocation5], 0
      %s143 = sshll.u32 [#allocation4], 4
      %s144 = int_to_ptr.vmem [resolvable:$true] %s143
      %s145 = sshll.u32 %s7, 4
      %s146 = int_to_ptr.hbm [resolvable:$true] %s145
      %148 = dma.vmem_to_hbm [thread:$0]  %s144, 32, %s146, [#allocation5]
    $region33: #{bert_model_train_forward.3} parent=1 // pred_fallthru
      _
    // Predicated region
    $region34: #{bert_model_train_forward.3} parent=1 // pred_check
      _
    $region35: #{bert_model_train_forward.3} parent=1 // pred_check_branch
      %150 = sbr.rel (0) target = $region37
    $region36: #{bert_model_train_forward.3} parent=1 // pred_region
      %152 = vsyncadd [#allocation5], 0
      %s154 = sshll.u32 [#allocation6], 4
      %s155 = int_to_ptr.vmem [resolvable:$true] %s154
      %s156 = sshll.u32 %s8, 4
      %s157 = int_to_ptr.hbm [resolvable:$true] %s156
      %159 = dma.vmem_to_hbm [thread:$0]  %s155, 32, %s157, [#allocation5]
    $region37: #{bert_model_train_forward.3} parent=1 // pred_fallthru
      _
    // Predicated region
    $region38: #{bert_model_train_forward.3} parent=1 // pred_check
      _
    $region39: #{bert_model_train_forward.3} parent=1 // pred_check_branch
      %161 = sbr.rel (0) target = $region41
    $region40: #{bert_model_train_forward.3} parent=1 // pred_region
      %163 = dma.done [#allocation3], 16
    $region41: #{bert_model_train_forward.3} parent=1 // pred_fallthru
      _
    // Predicated region
    $region42: #{bert_model_train_forward.3} parent=1 // pred_check
      _
    $region43: #{bert_model_train_forward.3} parent=1 // pred_check_branch
      %165 = sbr.rel (0) target = $region45
    $region44: #{bert_model_train_forward.3} parent=1 // pred_region
      %167 = dma.done [#allocation5], 32
    $region45: #{bert_model_train_forward.3} parent=1 // pred_fallthru
      _
    // Predicated region
    $region46: #{bert_model_train_forward.3} parent=1 // pred_check
      _
    $region47: #{bert_model_train_forward.3} parent=1 // pred_check_branch
      %169 = sbr.rel (0) target = $region49
    $region48: #{bert_model_train_forward.3} parent=1 // pred_region
      %171 = dma.done [#allocation5], 32
    $region49: #{bert_model_train_forward.3} parent=1 // pred_fallthru
      _
    %172 = vsyncpa [#allocation3], 1
    %173 = vsyncpa [#allocation5], 1

// kernel: bert_model_train_forward.2
$region0: #{bert_model_train_forward.2}
  #allocation0 [shape = 'u32[]', space=smem, size = 0x4, offset = 0x4, fixed_abs, tag = 'smem constant byte address 0x4 - core index']
  #allocation1 [shape = 'u32[72,128]{1,0:T(1,128)}', space=vmem, size = 0x9000, scoped, tag = 'internal scratch']
  #allocation2 [shape = 'f32[16,32]{1,0:T(8,128)}', space=vmem, size = 0x2000, scoped, tag = 'scratch operand']
  %s0 = inlined_call_operand.vmem [shape: f32[16,32], index: 0, kind: input, shape index: {}]
  %s1 = inlined_call_operand.vmem [shape: f32[16,16], index: 1, kind: input, shape index: {}]
  %s2 = inlined_call_operand.vmem [shape: f32[1,32], index: 2, kind: input, shape index: {}]
  %s3 = inlined_call_operand.vmem [shape: f32[1,32], index: 3, kind: input, shape index: {}]
  %s4 = inlined_call_operand.vmem [shape: f32[2,32,96], index: 4, kind: input, shape index: {}]
  %s5 = inlined_call_operand.vmem [shape: f32[2,1,96], index: 5, kind: input, shape index: {}]
  %s6 = inlined_call_operand.vmem [shape: f32[2,32,32], index: 6, kind: input, shape index: {}]
  %s7 = inlined_call_operand.vmem [shape: f32[2,1,32], index: 7, kind: input, shape index: {}, may-alias: {7,9,13,15}]
  %s8 = inlined_call_operand.vmem [shape: f32[2,1,32], index: 8, kind: input, shape index: {}, may-alias: {8,14}]
  %s9 = inlined_call_operand.vmem [shape: f32[2,1,32], index: 9, kind: input, shape index: {}, may-alias: {7,9,13,15}]
  %s10 = inlined_call_operand.vmem [shape: f32[2,32,64], index: 10, kind: input, shape index: {}]
  %s11 = inlined_call_operand.vmem [shape: f32[2,1,64], index: 11, kind: input, shape index: {}]
  %s12 = inlined_call_operand.vmem [shape: f32[2,64,32], index: 12, kind: input, shape index: {}]
  %s13 = inlined_call_operand.vmem [shape: f32[2,1,32], index: 13, kind: input, shape index: {}, may-alias: {7,9,13,15}]
  %s14 = inlined_call_operand.vmem [shape: f32[2,1,32], index: 14, kind: input, shape index: {}, may-alias: {8,14}]
  %s15 = inlined_call_operand.vmem [shape: f32[2,1,32], index: 15, kind: input, shape index: {}, may-alias: {7,9,13,15}]
  %s16 = inlined_call_operand.vmem [shape: f32[16,32], index: 16, kind: output, shape index: {}]
  %s17 = sld [smem:[#allocation0]]
  $region101: #{bert_model_train_forward.2} parent=0
    _
  %s19 = ssub.s32 1, %s17
  %s20 = scalar_select 0, %s19, %s17
  loop: start=0, step=1, limit=4
  $region2: #{bert_model_train_forward.2} parent=0 // loop_pre_header
    _
  $region3: #{bert_model_train_forward.2} parent=0 // loop_header
    %s22 = sphi 0, %s26
    %p23 = scmp.ge.s32.totalorder %s22, 4
    %s30 = sphi 0, %s30
    %s32 = sphi 0, %s30
    %s33 = sphi 0, %s32
    %s47 = sphi 0, %s33
    %s51 = sphi 0, %s51
    %s53 = sphi 0, %s51
    %s54 = sphi 0, %s53
    %s68 = sphi 0, %s54
    %s72 = sphi 0, %s72
    %s74 = sphi 0, %s72
    %s75 = sphi 0, %s74
    %s89 = sphi 0, %s75
    %s93 = sphi 0, %s93
    %s95 = sphi 0, %s93
    %s96 = sphi 0, %s95
    %s110 = sphi 0, %s96
    %s116 = sphi 0, %s118
    %s119 = sphi 0, %s116
    %s120 = sphi 0, %s119
    %s136 = sphi 0, %s120
    %s142 = sphi 0, %s144
    %s145 = sphi 0, %s142
    %s146 = sphi 0, %s145
    %s162 = sphi 0, %s146
    %s168 = sphi 0, %s170
    %s171 = sphi 0, %s168
    %s172 = sphi 0, %s171
    %s188 = sphi 0, %s172
    %s194 = sphi 0, %s196
    %s197 = sphi 0, %s194
    %s198 = sphi 0, %s197
    %s214 = sphi 0, %s198
    %s220 = sphi 0, %s222
    %s223 = sphi 0, %s220
    %s224 = sphi 0, %s223
    %s240 = sphi 0, %s224
    %s246 = sphi 0, %s248
    %s249 = sphi 0, %s246
    %s250 = sphi 0, %s249
    %s266 = sphi 0, %s250
    %s272 = sphi 0, %s274
    %s275 = sphi 0, %s272
    %s276 = sphi 0, %s275
    %s292 = sphi 0, %s276
    %s298 = sphi 0, %s300
    %s301 = sphi 0, %s298
    %s302 = sphi 0, %s301
    %s318 = sphi 0, %s302
    %s324 = sphi 0, %s326
    %s327 = sphi 0, %s324
    %s328 = sphi 0, %s327
    %s344 = sphi 0, %s328
    %s350 = sphi 0, %s352
    %s353 = sphi 0, %s350
    %s354 = sphi 0, %s353
    %s370 = sphi 0, %s354
    %s376 = sphi 0, %s378
    %s379 = sphi 0, %s376
    %s380 = sphi 0, %s379
    %s396 = sphi 0, %s380
    %s402 = sphi 0, %s404
    %s405 = sphi 0, %s402
    %s406 = sphi 0, %s405
    %s422 = sphi 0, %s406
    %s426 = sphi 0, %s426
    %s428 = sphi 0, %s426
    %s429 = sphi 0, %s428
    %s443 = sphi 0, %s429
  $region4: #{bert_model_train_forward.2} parent=0 // loop_header_branch
    %25 = sbr.rel (%p23) target = $region8
  $region5: #{bert_model_train_forward.2} parent=0 // loop_body
    %s27 = ssub.s32 %s22, 1
    %s28 = ssub.s32 %s22, 2
    %s29 = sadd.s32 %s22, 1
    %s31 = sadd.s32 %s30, 1
    %p34 = scmp.eq.s32.totalorder %s22, 1
    %p35 = scmp.ne.s32.totalorder %s30, %s32
    %p36 = scmp.eq.s32.totalorder %s22, 0
    %p37 = por %p35, %p36
    %p38 = scmp.ne.s32.totalorder %s30, %s32
    %p39 = scmp.eq.s32.totalorder %s27, 1
    %p40 = por %p38, %p39
    %p41 = scmp.ne.s32.totalorder %s32, %s33
    %p42 = scmp.eq.s32.totalorder %s27, 0
    %p43 = por %p41, %p42
    %p44 = scmp.ne.s32.totalorder %s32, %s33
    %p45 = scmp.eq.s32.totalorder %s28, 1
    %p46 = por %p44, %p45
    %p48 = scmp.ne.s32.totalorder %s33, %s47
    %p49 = scmp.eq.s32.totalorder %s28, 0
    %p50 = por %p48, %p49
    %s52 = sadd.s32 %s51, 1
    %p55 = scmp.eq.s32.totalorder %s22, 1
    %p56 = scmp.ne.s32.totalorder %s51, %s53
    %p57 = scmp.eq.s32.totalorder %s22, 0
    %p58 = por %p56, %p57
    %p59 = scmp.ne.s32.totalorder %s51, %s53
    %p60 = scmp.eq.s32.totalorder %s27, 1
    %p61 = por %p59, %p60
    %p62 = scmp.ne.s32.totalorder %s53, %s54
    %p63 = scmp.eq.s32.totalorder %s27, 0
    %p64 = por %p62, %p63
    %p65 = scmp.ne.s32.totalorder %s53, %s54
    %p66 = scmp.eq.s32.totalorder %s28, 1
    %p67 = por %p65, %p66
    %p69 = scmp.ne.s32.totalorder %s54, %s68
    %p70 = scmp.eq.s32.totalorder %s28, 0
    %p71 = por %p69, %p70
    %s73 = sadd.s32 %s72, 1
    %p76 = scmp.eq.s32.totalorder %s22, 1
    %p77 = scmp.ne.s32.totalorder %s72, %s74
    %p78 = scmp.eq.s32.totalorder %s22, 0
    %p79 = por %p77, %p78
    %p80 = scmp.ne.s32.totalorder %s72, %s74
    %p81 = scmp.eq.s32.totalorder %s27, 1
    %p82 = por %p80, %p81
    %p83 = scmp.ne.s32.totalorder %s74, %s75
    %p84 = scmp.eq.s32.totalorder %s27, 0
    %p85 = por %p83, %p84
    %p86 = scmp.ne.s32.totalorder %s74, %s75
    %p87 = scmp.eq.s32.totalorder %s28, 1
    %p88 = por %p86, %p87
    %p90 = scmp.ne.s32.totalorder %s75, %s89
    %p91 = scmp.eq.s32.totalorder %s28, 0
    %p92 = por %p90, %p91
    %s94 = sadd.s32 %s93, 1
    %p97 = scmp.eq.s32.totalorder %s22, 1
    %p98 = scmp.ne.s32.totalorder %s93, %s95
    %p99 = scmp.eq.s32.totalorder %s22, 0
    %p100 = por %p98, %p99
    %p101 = scmp.ne.s32.totalorder %s93, %s95
    %p102 = scmp.eq.s32.totalorder %s27, 1
    %p103 = por %p101, %p102
    %p104 = scmp.ne.s32.totalorder %s95, %s96
    %p105 = scmp.eq.s32.totalorder %s27, 0
    %p106 = por %p104, %p105
    %p107 = scmp.ne.s32.totalorder %s95, %s96
    %p108 = scmp.eq.s32.totalorder %s28, 1
    %p109 = por %p107, %p108
    %p111 = scmp.ne.s32.totalorder %s96, %s110
    %p112 = scmp.eq.s32.totalorder %s28, 0
    %p113 = por %p111, %p112
    %s114 = ssub.s32 %s22, %s29
    %p115 = scmp.eq.s32.totalorder %s114, 0
    %s117 = sadd.s32 %s116, 1
    %s118 = scalar_select %p115, %s116, %s117
    %p121 = pneg %p115
    %p122 = scmp.eq.s32.totalorder %s22, 1
    %p123 = por %p121, %p122
    %p124 = scmp.ne.s32.totalorder %s116, %s119
    %p125 = scmp.eq.s32.totalorder %s22, 0
    %p126 = por %p124, %p125
    %p127 = scmp.ne.s32.totalorder %s116, %s119
    %p128 = scmp.eq.s32.totalorder %s27, 1
    %p129 = por %p127, %p128
    %p130 = scmp.ne.s32.totalorder %s119, %s120
    %p131 = scmp.eq.s32.totalorder %s27, 0
    %p132 = por %p130, %p131
    %p133 = scmp.ne.s32.totalorder %s119, %s120
    %p134 = scmp.eq.s32.totalorder %s28, 1
    %p135 = por %p133, %p134
    %p137 = scmp.ne.s32.totalorder %s120, %s136
    %p138 = scmp.eq.s32.totalorder %s28, 0
    %p139 = por %p137, %p138
    %s140 = ssub.s32 %s22, %s29
    %p141 = scmp.eq.s32.totalorder %s140, 0
    %s143 = sadd.s32 %s142, 1
    %s144 = scalar_select %p141, %s142, %s143
    %p147 = pneg %p141
    %p148 = scmp.eq.s32.totalorder %s22, 1
    %p149 = por %p147, %p148
    %p150 = scmp.ne.s32.totalorder %s142, %s145
    %p151 = scmp.eq.s32.totalorder %s22, 0
    %p152 = por %p150, %p151
    %p153 = scmp.ne.s32.totalorder %s142, %s145
    %p154 = scmp.eq.s32.totalorder %s27, 1
    %p155 = por %p153, %p154
    %p156 = scmp.ne.s32.totalorder %s145, %s146
    %p157 = scmp.eq.s32.totalorder %s27, 0
    %p158 = por %p156, %p157
    %p159 = scmp.ne.s32.totalorder %s145, %s146
    %p160 = scmp.eq.s32.totalorder %s28, 1
    %p161 = por %p159, %p160
    %p163 = scmp.ne.s32.totalorder %s146, %s162
    %p164 = scmp.eq.s32.totalorder %s28, 0
    %p165 = por %p163, %p164
    %s166 = ssub.s32 %s22, %s29
    %p167 = scmp.eq.s32.totalorder %s166, 0
    %s169 = sadd.s32 %s168, 1
    %s170 = scalar_select %p167, %s168, %s169
    %p173 = pneg %p167
    %p174 = scmp.eq.s32.totalorder %s22, 1
    %p175 = por %p173, %p174
    %p176 = scmp.ne.s32.totalorder %s168, %s171
    %p177 = scmp.eq.s32.totalorder %s22, 0
    %p178 = por %p176, %p177
    %p179 = scmp.ne.s32.totalorder %s168, %s171
    %p180 = scmp.eq.s32.totalorder %s27, 1
    %p181 = por %p179, %p180
    %p182 = scmp.ne.s32.totalorder %s171, %s172
    %p183 = scmp.eq.s32.totalorder %s27, 0
    %p184 = por %p182, %p183
    %p185 = scmp.ne.s32.totalorder %s171, %s172
    %p186 = scmp.eq.s32.totalorder %s28, 1
    %p187 = por %p185, %p186
    %p189 = scmp.ne.s32.totalorder %s172, %s188
    %p190 = scmp.eq.s32.totalorder %s28, 0
    %p191 = por %p189, %p190
    %s192 = ssub.s32 %s22, %s29
    %p193 = scmp.eq.s32.totalorder %s192, 0
    %s195 = sadd.s32 %s194, 1
    %s196 = scalar_select %p193, %s194, %s195
    %p199 = pneg %p193
    %p200 = scmp.eq.s32.totalorder %s22, 1
    %p201 = por %p199, %p200
    %p202 = scmp.ne.s32.totalorder %s194, %s197
    %p203 = scmp.eq.s32.totalorder %s22, 0
    %p204 = por %p202, %p203
    %p205 = scmp.ne.s32.totalorder %s194, %s197
    %p206 = scmp.eq.s32.totalorder %s27, 1
    %p207 = por %p205, %p206
    %p208 = scmp.ne.s32.totalorder %s197, %s198
    %p209 = scmp.eq.s32.totalorder %s27, 0
    %p210 = por %p208, %p209
    %p211 = scmp.ne.s32.totalorder %s197, %s198
    %p212 = scmp.eq.s32.totalorder %s28, 1
    %p213 = por %p211, %p212
    %p215 = scmp.ne.s32.totalorder %s198, %s214
    %p216 = scmp.eq.s32.totalorder %s28, 0
    %p217 = por %p215, %p216
    %s218 = ssub.s32 %s22, %s29
    %p219 = scmp.eq.s32.totalorder %s218, 0
    %s221 = sadd.s32 %s220, 1
    %s222 = scalar_select %p219, %s220, %s221
    %p225 = pneg %p219
    %p226 = scmp.eq.s32.totalorder %s22, 1
    %p227 = por %p225, %p226
    %p228 = scmp.ne.s32.totalorder %s220, %s223
    %p229 = scmp.eq.s32.totalorder %s22, 0
    %p230 = por %p228, %p229
    %p231 = scmp.ne.s32.totalorder %s220, %s223
    %p232 = scmp.eq.s32.totalorder %s27, 1
    %p233 = por %p231, %p232
    %p234 = scmp.ne.s32.totalorder %s223, %s224
    %p235 = scmp.eq.s32.totalorder %s27, 0
    %p236 = por %p234, %p235
    %p237 = scmp.ne.s32.totalorder %s223, %s224
    %p238 = scmp.eq.s32.totalorder %s28, 1
    %p239 = por %p237, %p238
    %p241 = scmp.ne.s32.totalorder %s224, %s240
    %p242 = scmp.eq.s32.totalorder %s28, 0
    %p243 = por %p241, %p242
    %s244 = ssub.s32 %s22, %s29
    %p245 = scmp.eq.s32.totalorder %s244, 0
    %s247 = sadd.s32 %s246, 1
    %s248 = scalar_select %p245, %s246, %s247
    %p251 = pneg %p245
    %p252 = scmp.eq.s32.totalorder %s22, 1
    %p253 = por %p251, %p252
    %p254 = scmp.ne.s32.totalorder %s246, %s249
    %p255 = scmp.eq.s32.totalorder %s22, 0
    %p256 = por %p254, %p255
    %p257 = scmp.ne.s32.totalorder %s246, %s249
    %p258 = scmp.eq.s32.totalorder %s27, 1
    %p259 = por %p257, %p258
    %p260 = scmp.ne.s32.totalorder %s249, %s250
    %p261 = scmp.eq.s32.totalorder %s27, 0
    %p262 = por %p260, %p261
    %p263 = scmp.ne.s32.totalorder %s249, %s250
    %p264 = scmp.eq.s32.totalorder %s28, 1
    %p265 = por %p263, %p264
    %p267 = scmp.ne.s32.totalorder %s250, %s266
    %p268 = scmp.eq.s32.totalorder %s28, 0
    %p269 = por %p267, %p268
    %s270 = ssub.s32 %s22, %s29
    %p271 = scmp.eq.s32.totalorder %s270, 0
    %s273 = sadd.s32 %s272, 1
    %s274 = scalar_select %p271, %s272, %s273
    %p277 = pneg %p271
    %p278 = scmp.eq.s32.totalorder %s22, 1
    %p279 = por %p277, %p278
    %p280 = scmp.ne.s32.totalorder %s272, %s275
    %p281 = scmp.eq.s32.totalorder %s22, 0
    %p282 = por %p280, %p281
    %p283 = scmp.ne.s32.totalorder %s272, %s275
    %p284 = scmp.eq.s32.totalorder %s27, 1
    %p285 = por %p283, %p284
    %p286 = scmp.ne.s32.totalorder %s275, %s276
    %p287 = scmp.eq.s32.totalorder %s27, 0
    %p288 = por %p286, %p287
    %p289 = scmp.ne.s32.totalorder %s275, %s276
    %p290 = scmp.eq.s32.totalorder %s28, 1
    %p291 = por %p289, %p290
    %p293 = scmp.ne.s32.totalorder %s276, %s292
    %p294 = scmp.eq.s32.totalorder %s28, 0
    %p295 = por %p293, %p294
    %s296 = ssub.s32 %s22, %s29
    %p297 = scmp.eq.s32.totalorder %s296, 0
    %s299 = sadd.s32 %s298, 1
    %s300 = scalar_select %p297, %s298, %s299
    %p303 = pneg %p297
    %p304 = scmp.eq.s32.totalorder %s22, 1
    %p305 = por %p303, %p304
    %p306 = scmp.ne.s32.totalorder %s298, %s301
    %p307 = scmp.eq.s32.totalorder %s22, 0
    %p308 = por %p306, %p307
    %p309 = scmp.ne.s32.totalorder %s298, %s301
    %p310 = scmp.eq.s32.totalorder %s27, 1
    %p311 = por %p309, %p310
    %p312 = scmp.ne.s32.totalorder %s301, %s302
    %p313 = scmp.eq.s32.totalorder %s27, 0
    %p314 = por %p312, %p313
    %p315 = scmp.ne.s32.totalorder %s301, %s302
    %p316 = scmp.eq.s32.totalorder %s28, 1
    %p317 = por %p315, %p316
    %p319 = scmp.ne.s32.totalorder %s302, %s318
    %p320 = scmp.eq.s32.totalorder %s28, 0
    %p321 = por %p319, %p320
    %s322 = ssub.s32 %s22, %s29
    %p323 = scmp.eq.s32.totalorder %s322, 0
    %s325 = sadd.s32 %s324, 1
    %s326 = scalar_select %p323, %s324, %s325
    %p329 = pneg %p323
    %p330 = scmp.eq.s32.totalorder %s22, 1
    %p331 = por %p329, %p330
    %p332 = scmp.ne.s32.totalorder %s324, %s327
    %p333 = scmp.eq.s32.totalorder %s22, 0
    %p334 = por %p332, %p333
    %p335 = scmp.ne.s32.totalorder %s324, %s327
    %p336 = scmp.eq.s32.totalorder %s27, 1
    %p337 = por %p335, %p336
    %p338 = scmp.ne.s32.totalorder %s327, %s328
    %p339 = scmp.eq.s32.totalorder %s27, 0
    %p340 = por %p338, %p339
    %p341 = scmp.ne.s32.totalorder %s327, %s328
    %p342 = scmp.eq.s32.totalorder %s28, 1
    %p343 = por %p341, %p342
    %p345 = scmp.ne.s32.totalorder %s328, %s344
    %p346 = scmp.eq.s32.totalorder %s28, 0
    %p347 = por %p345, %p346
    %s348 = ssub.s32 %s22, %s29
    %p349 = scmp.eq.s32.totalorder %s348, 0
    %s351 = sadd.s32 %s350, 1
    %s352 = scalar_select %p349, %s350, %s351
    %p355 = pneg %p349
    %p356 = scmp.eq.s32.totalorder %s22, 1
    %p357 = por %p355, %p356
    %p358 = scmp.ne.s32.totalorder %s350, %s353
    %p359 = scmp.eq.s32.totalorder %s22, 0
    %p360 = por %p358, %p359
    %p361 = scmp.ne.s32.totalorder %s350, %s353
    %p362 = scmp.eq.s32.totalorder %s27, 1
    %p363 = por %p361, %p362
    %p364 = scmp.ne.s32.totalorder %s353, %s354
    %p365 = scmp.eq.s32.totalorder %s27, 0
    %p366 = por %p364, %p365
    %p367 = scmp.ne.s32.totalorder %s353, %s354
    %p368 = scmp.eq.s32.totalorder %s28, 1
    %p369 = por %p367, %p368
    %p371 = scmp.ne.s32.totalorder %s354, %s370
    %p372 = scmp.eq.s32.totalorder %s28, 0
    %p373 = por %p371, %p372
    %s374 = ssub.s32 %s22, %s29
    %p375 = scmp.eq.s32.totalorder %s374, 0
    %s377 = sadd.s32 %s376, 1
    %s378 = scalar_select %p375, %s376, %s377
    %p381 = pneg %p375
    %p382 = scmp.eq.s32.totalorder %s22, 1
    %p383 = por %p381, %p382
    %p384 = scmp.ne.s32.totalorder %s376, %s379
    %p385 = scmp.eq.s32.totalorder %s22, 0
    %p386 = por %p384, %p385
    %p387 = scmp.ne.s32.totalorder %s376, %s379
    %p388 = scmp.eq.s32.totalorder %s27, 1
    %p389 = por %p387, %p388
    %p390 = scmp.ne.s32.totalorder %s379, %s380
    %p391 = scmp.eq.s32.totalorder %s27, 0
    %p392 = por %p390, %p391
    %p393 = scmp.ne.s32.totalorder %s379, %s380
    %p394 = scmp.eq.s32.totalorder %s28, 1
    %p395 = por %p393, %p394
    %p397 = scmp.ne.s32.totalorder %s380, %s396
    %p398 = scmp.eq.s32.totalorder %s28, 0
    %p399 = por %p397, %p398
    %s400 = ssub.s32 %s22, %s29
    %p401 = scmp.eq.s32.totalorder %s400, 0
    %s403 = sadd.s32 %s402, 1
    %s404 = scalar_select %p401, %s402, %s403
    %p407 = pneg %p401
    %p408 = scmp.eq.s32.totalorder %s22, 1
    %p409 = por %p407, %p408
    %p410 = scmp.ne.s32.totalorder %s402, %s405
    %p411 = scmp.eq.s32.totalorder %s22, 0
    %p412 = por %p410, %p411
    %p413 = scmp.ne.s32.totalorder %s402, %s405
    %p414 = scmp.eq.s32.totalorder %s27, 1
    %p415 = por %p413, %p414
    %p416 = scmp.ne.s32.totalorder %s405, %s406
    %p417 = scmp.eq.s32.totalorder %s27, 0
    %p418 = por %p416, %p417
    %p419 = scmp.ne.s32.totalorder %s405, %s406
    %p420 = scmp.eq.s32.totalorder %s28, 1
    %p421 = por %p419, %p420
    %p423 = scmp.ne.s32.totalorder %s406, %s422
    %p424 = scmp.eq.s32.totalorder %s28, 0
    %p425 = por %p423, %p424
    %s427 = sadd.s32 %s426, 1
    %p430 = scmp.eq.s32.totalorder %s22, 1
    %p431 = scmp.ne.s32.totalorder %s426, %s428
    %p432 = scmp.eq.s32.totalorder %s22, 0
    %p433 = por %p431, %p432
    %p434 = scmp.ne.s32.totalorder %s426, %s428
    %p435 = scmp.eq.s32.totalorder %s27, 1
    %p436 = por %p434, %p435
    %p437 = scmp.ne.s32.totalorder %s428, %s429
    %p438 = scmp.eq.s32.totalorder %s27, 0
    %p439 = por %p437, %p438
    %p440 = scmp.ne.s32.totalorder %s428, %s429
    %p441 = scmp.eq.s32.totalorder %s28, 1
    %p442 = por %p440, %p441
    %p444 = scmp.ne.s32.totalorder %s429, %s443
    %p445 = scmp.eq.s32.totalorder %s28, 0
    %p446 = por %p444, %p445
    %p447 = scmp.le.s32.totalorder 1, %s22
    %p448 = scmp.lt.s32.totalorder %s22, 3
    %p449 = pnand %p447, %p448
    %p450 = pneg %p449
    // Predicated region
    $region9: #{bert_model_train_forward.2} parent=5 // pred_check
      _
    $region10: #{bert_model_train_forward.2} parent=5 // pred_check_branch
      %452 = sbr.rel (%p449) target = $region12
    $region11: #{bert_model_train_forward.2} parent=5 // pred_region
      %s453 = ssub.s32 %s22, 1
      // Predicated region
      $region13: #{bert_model_train_forward.2} parent=11 // pred_check
        %p454 = pneg %p43
      $region14: #{bert_model_train_forward.2} parent=11 // pred_check_branch
        %456 = sbr.rel (%p454) target = $region16
      $region15: #{bert_model_train_forward.2} parent=11 // pred_region
        _
      $region16: #{bert_model_train_forward.2} parent=11 // pred_fallthru
        _
      // Predicated region
      $region17: #{bert_model_train_forward.2} parent=11 // pred_check
        %p457 = pneg %p64
      $region18: #{bert_model_train_forward.2} parent=11 // pred_check_branch
        %459 = sbr.rel (%p457) target = $region20
      $region19: #{bert_model_train_forward.2} parent=11 // pred_region
        _
      $region20: #{bert_model_train_forward.2} parent=11 // pred_fallthru
        _
      // Predicated region
      $region21: #{bert_model_train_forward.2} parent=11 // pred_check
        %p460 = pneg %p85
      $region22: #{bert_model_train_forward.2} parent=11 // pred_check_branch
        %462 = sbr.rel (%p460) target = $region24
      $region23: #{bert_model_train_forward.2} parent=11 // pred_region
        _
      $region24: #{bert_model_train_forward.2} parent=11 // pred_fallthru
        _
      // Predicated region
      $region25: #{bert_model_train_forward.2} parent=11 // pred_check
        %p463 = pneg %p106
      $region26: #{bert_model_train_forward.2} parent=11 // pred_check_branch
        %465 = sbr.rel (%p463) target = $region28
      $region27: #{bert_model_train_forward.2} parent=11 // pred_region
        _
      $region28: #{bert_model_train_forward.2} parent=11 // pred_fallthru
        _
    $region12: #{bert_model_train_forward.2} parent=5 // pred_fallthru
      _
    %p466 = scmp.lt.s32.totalorder %s22, 2
    // Predicated region
    $region29: #{bert_model_train_forward.2} parent=5 // pred_check
      %p467 = pneg %p466
    $region30: #{bert_model_train_forward.2} parent=5 // pred_check_branch
      %469 = sbr.rel (%p467) target = $region32
    $region31: #{bert_model_train_forward.2} parent=5 // pred_region
      // Predicated region
      $region33: #{bert_model_train_forward.2} parent=31 // pred_check
        %p470 = pneg %p126
      $region34: #{bert_model_train_forward.2} parent=31 // pred_check_branch
        %472 = sbr.rel (%p470) target = $region36
      $region35: #{bert_model_train_forward.2} parent=31 // pred_region
        %p473 = scmp.lt.s32.totalorder %s22, 1
        %s474 = scalar_select %p473, %s22, 1
        %s475 = smul.addr %s474, 4
        %s476 = smul.addr %s475, 8
        %s477 = scalar_lea.vmem %s4, %s476
      $region36: #{bert_model_train_forward.2} parent=31 // pred_fallthru
        _
      // Predicated region
      $region37: #{bert_model_train_forward.2} parent=31 // pred_check
        %p478 = pneg %p152
      $region38: #{bert_model_train_forward.2} parent=31 // pred_check_branch
        %480 = sbr.rel (%p478) target = $region40
      $region39: #{bert_model_train_forward.2} parent=31 // pred_region
        %p481 = scmp.lt.s32.totalorder %s22, 1
        %s482 = scalar_select %p481, %s22, 1
        %s483 = scalar_lea.vmem %s5, %s482
      $region40: #{bert_model_train_forward.2} parent=31 // pred_fallthru
        _
      // Predicated region
      $region41: #{bert_model_train_forward.2} parent=31 // pred_check
        %p484 = pneg %p178
      $region42: #{bert_model_train_forward.2} parent=31 // pred_check_branch
        %486 = sbr.rel (%p484) target = $region44
      $region43: #{bert_model_train_forward.2} parent=31 // pred_region
        %p487 = scmp.lt.s32.totalorder %s22, 1
        %s488 = scalar_select %p487, %s22, 1
        %s489 = smul.addr %s488, 4
        %s490 = smul.addr %s489, 8
        %s491 = scalar_lea.vmem %s6, %s490
      $region44: #{bert_model_train_forward.2} parent=31 // pred_fallthru
        _
      // Predicated region
      $region45: #{bert_model_train_forward.2} parent=31 // pred_check
        %p492 = pneg %p204
      $region46: #{bert_model_train_forward.2} parent=31 // pred_check_branch
        %494 = sbr.rel (%p492) target = $region48
      $region47: #{bert_model_train_forward.2} parent=31 // pred_region
        %p495 = scmp.lt.s32.totalorder %s22, 1
        %s496 = scalar_select %p495, %s22, 1
        %s497 = scalar_lea.vmem %s7, %s496
      $region48: #{bert_model_train_forward.2} parent=31 // pred_fallthru
        _
      // Predicated region
      $region49: #{bert_model_train_forward.2} parent=31 // pred_check
        %p498 = pneg %p230
      $region50: #{bert_model_train_forward.2} parent=31 // pred_check_branch
        %500 = sbr.rel (%p498) target = $region52
      $region51: #{bert_model_train_forward.2} parent=31 // pred_region
        %p501 = scmp.lt.s32.totalorder %s22, 1
        %s502 = scalar_select %p501, %s22, 1
        %s503 = scalar_lea.vmem %s8, %s502
      $region52: #{bert_model_train_forward.2} parent=31 // pred_fallthru
        _
      // Predicated region
      $region53: #{bert_model_train_forward.2} parent=31 // pred_check
        %p504 = pneg %p256
      $region54: #{bert_model_train_forward.2} parent=31 // pred_check_branch
        %506 = sbr.rel (%p504) target = $region56
      $region55: #{bert_model_train_forward.2} parent=31 // pred_region
        %p507 = scmp.lt.s32.totalorder %s22, 1
        %s508 = scalar_select %p507, %s22, 1
        %s509 = scalar_lea.vmem %s9, %s508
      $region56: #{bert_model_train_forward.2} parent=31 // pred_fallthru
        _
      // Predicated region
      $region57: #{bert_model_train_forward.2} parent=31 // pred_check
        %p510 = pneg %p282
      $region58: #{bert_model_train_forward.2} parent=31 // pred_check_branch
        %512 = sbr.rel (%p510) target = $region60
      $region59: #{bert_model_train_forward.2} parent=31 // pred_region
        %p513 = scmp.lt.s32.totalorder %s22, 1
        %s514 = scalar_select %p513, %s22, 1
        %s515 = smul.addr %s514, 4
        %s516 = smul.addr %s515, 8
        %s517 = scalar_lea.vmem %s10, %s516
      $region60: #{bert_model_train_forward.2} parent=31 // pred_fallthru
        _
      // Predicated region
      $region61: #{bert_model_train_forward.2} parent=31 // pred_check
        %p518 = pneg %p308
      $region62: #{bert_model_train_forward.2} parent=31 // pred_check_branch
        %520 = sbr.rel (%p518) target = $region64
      $region63: #{bert_model_train_forward.2} parent=31 // pred_region
        %p521 = scmp.lt.s32.totalorder %s22, 1
        %s522 = scalar_select %p521, %s22, 1
        %s523 = scalar_lea.vmem %s11, %s522
      $region64: #{bert_model_train_forward.2} parent=31 // pred_fallthru
        _
      // Predicated region
      $region65: #{bert_model_train_forward.2} parent=31 // pred_check
        %p524 = pneg %p334
      $region66: #{bert_model_train_forward.2} parent=31 // pred_check_branch
        %526 = sbr.rel (%p524) target = $region68
      $region67: #{bert_model_train_forward.2} parent=31 // pred_region
        %p527 = scmp.lt.s32.totalorder %s22, 1
        %s528 = scalar_select %p527, %s22, 1
        %s529 = smul.addr %s528, 8
        %s530 = smul.addr %s529, 8
        %s531 = scalar_lea.vmem %s12, %s530
      $region68: #{bert_model_train_forward.2} parent=31 // pred_fallthru
        _
      // Predicated region
      $region69: #{bert_model_train_forward.2} parent=31 // pred_check
        %p532 = pneg %p360
      $region70: #{bert_model_train_forward.2} parent=31 // pred_check_branch
        %534 = sbr.rel (%p532) target = $region72
      $region71: #{bert_model_train_forward.2} parent=31 // pred_region
        %p535 = scmp.lt.s32.totalorder %s22, 1
        %s536 = scalar_select %p535, %s22, 1
        %s537 = scalar_lea.vmem %s13, %s536
      $region72: #{bert_model_train_forward.2} parent=31 // pred_fallthru
        _
      // Predicated region
      $region73: #{bert_model_train_forward.2} parent=31 // pred_check
        %p538 = pneg %p386
      $region74: #{bert_model_train_forward.2} parent=31 // pred_check_branch
        %540 = sbr.rel (%p538) target = $region76
      $region75: #{bert_model_train_forward.2} parent=31 // pred_region
        %p541 = scmp.lt.s32.totalorder %s22, 1
        %s542 = scalar_select %p541, %s22, 1
        %s543 = scalar_lea.vmem %s14, %s542
      $region76: #{bert_model_train_forward.2} parent=31 // pred_fallthru
        _
      // Predicated region
      $region77: #{bert_model_train_forward.2} parent=31 // pred_check
        %p544 = pneg %p412
      $region78: #{bert_model_train_forward.2} parent=31 // pred_check_branch
        %546 = sbr.rel (%p544) target = $region80
      $region79: #{bert_model_train_forward.2} parent=31 // pred_region
        %p547 = scmp.lt.s32.totalorder %s22, 1
        %s548 = scalar_select %p547, %s22, 1
        %s549 = scalar_lea.vmem %s15, %s548
      $region80: #{bert_model_train_forward.2} parent=31 // pred_fallthru
        _
    $region32: #{bert_model_train_forward.2} parent=5 // pred_fallthru
      _
    %p550 = scmp.le.s32.totalorder 1, %s22
    %p551 = scmp.lt.s32.totalorder %s22, 3
    %p552 = pnand %p550, %p551
    %p553 = pneg %p552
    // Predicated region
    $region81: #{bert_model_train_forward.2} parent=5 // pred_check
      _
    $region82: #{bert_model_train_forward.2} parent=5 // pred_check_branch
      %555 = sbr.rel (%p552) target = $region84
    $region83: #{bert_model_train_forward.2} parent=5 // pred_region
      %s556 = ssub.s32 %s22, 1
      %p557 = pneg %p43
      %p558 = pneg %p40
      %p559 = pneg %p64
      %p560 = pneg %p61
      %p561 = pneg %p85
      %p562 = pneg %p82
      %p563 = pneg %p106
      %p564 = pneg %p103
      %p565 = scmp.lt.s32.totalorder %s27, 1
      %s566 = scalar_select %p565, %s27, 1
      %s567 = smul.addr %s566, 4
      %s568 = smul.addr %s567, 8
      %s569 = scalar_lea.vmem %s4, %s568
      %p570 = pneg %p132
      %p571 = pneg %p129
      %p572 = scmp.lt.s32.totalorder %s27, 1
      %s573 = scalar_select %p572, %s27, 1
      %s574 = scalar_lea.vmem %s5, %s573
      %p575 = pneg %p158
      %p576 = pneg %p155
      %p577 = scmp.lt.s32.totalorder %s27, 1
      %s578 = scalar_select %p577, %s27, 1
      %s579 = smul.addr %s578, 4
      %s580 = smul.addr %s579, 8
      %s581 = scalar_lea.vmem %s6, %s580
      %p582 = pneg %p184
      %p583 = pneg %p181
      %p584 = scmp.lt.s32.totalorder %s27, 1
      %s585 = scalar_select %p584, %s27, 1
      %s586 = scalar_lea.vmem %s7, %s585
      %p587 = pneg %p210
      %p588 = pneg %p207
      %p589 = scmp.lt.s32.totalorder %s27, 1
      %s590 = scalar_select %p589, %s27, 1
      %s591 = scalar_lea.vmem %s8, %s590
      %p592 = pneg %p236
      %p593 = pneg %p233
      %p594 = scmp.lt.s32.totalorder %s27, 1
      %s595 = scalar_select %p594, %s27, 1
      %s596 = scalar_lea.vmem %s9, %s595
      %p597 = pneg %p262
      %p598 = pneg %p259
      %p599 = scmp.lt.s32.totalorder %s27, 1
      %s600 = scalar_select %p599, %s27, 1
      %s601 = smul.addr %s600, 4
      %s602 = smul.addr %s601, 8
      %s603 = scalar_lea.vmem %s10, %s602
      %p604 = pneg %p288
      %p605 = pneg %p285
      %p606 = scmp.lt.s32.totalorder %s27, 1
      %s607 = scalar_select %p606, %s27, 1
      %s608 = scalar_lea.vmem %s11, %s607
      %p609 = pneg %p314
      %p610 = pneg %p311
      %p611 = scmp.lt.s32.totalorder %s27, 1
      %s612 = scalar_select %p611, %s27, 1
      %s613 = smul.addr %s612, 8
      %s614 = smul.addr %s613, 8
      %s615 = scalar_lea.vmem %s12, %s614
      %p616 = pneg %p340
      %p617 = pneg %p337
      %p618 = scmp.lt.s32.totalorder %s27, 1
      %s619 = scalar_select %p618, %s27, 1
      %s620 = scalar_lea.vmem %s13, %s619
      %p621 = pneg %p366
      %p622 = pneg %p363
      %p623 = scmp.lt.s32.totalorder %s27, 1
      %s624 = scalar_select %p623, %s27, 1
      %s625 = scalar_lea.vmem %s14, %s624
      %p626 = pneg %p392
      %p627 = pneg %p389
      %p628 = scmp.lt.s32.totalorder %s27, 1
      %s629 = scalar_select %p628, %s27, 1
      %s630 = scalar_lea.vmem %s15, %s629
      %p631 = pneg %p418
      %p632 = pneg %p415
      %p633 = pneg %p439
      %p634 = pneg %p436
      %p635 = scmp.lt.s32.totalorder %s27, 1
      %s636 = scalar_select %p635, %s27, 1
      %s637 = smul.addr %s636, 4
      %s638 = smul.addr %s637, 8
      %s639 = scalar_lea.vmem %s4, %s638
      %p640 = scmp.lt.s32.totalorder %s27, 1
      %s641 = scalar_select %p640, %s27, 1
      %s642 = scalar_lea.vmem %s5, %s641
      %p643 = scmp.lt.s32.totalorder %s27, 1
      %s644 = scalar_select %p643, %s27, 1
      %s645 = smul.addr %s644, 4
      %s646 = smul.addr %s645, 8
      %s647 = scalar_lea.vmem %s6, %s646
      %p648 = scmp.lt.s32.totalorder %s27, 1
      %s649 = scalar_select %p648, %s27, 1
      %s650 = scalar_lea.vmem %s7, %s649
      %p651 = scmp.lt.s32.totalorder %s27, 1
      %s652 = scalar_select %p651, %s27, 1
      %s653 = scalar_lea.vmem %s8, %s652
      %p654 = scmp.lt.s32.totalorder %s27, 1
      %s655 = scalar_select %p654, %s27, 1
      %s656 = scalar_lea.vmem %s9, %s655
      %p657 = scmp.lt.s32.totalorder %s27, 1
      %s658 = scalar_select %p657, %s27, 1
      %s659 = smul.addr %s658, 4
      %s660 = smul.addr %s659, 8
      %s661 = scalar_lea.vmem %s10, %s660
      %p662 = scmp.lt.s32.totalorder %s27, 1
      %s663 = scalar_select %p662, %s27, 1
      %s664 = scalar_lea.vmem %s11, %s663
      %p665 = scmp.lt.s32.totalorder %s27, 1
      %s666 = scalar_select %p665, %s27, 1
      %s667 = smul.addr %s666, 8
      %s668 = smul.addr %s667, 8
      %s669 = scalar_lea.vmem %s12, %s668
      %p670 = scmp.lt.s32.totalorder %s27, 1
      %s671 = scalar_select %p670, %s27, 1
      %s672 = scalar_lea.vmem %s13, %s671
      %p673 = scmp.lt.s32.totalorder %s27, 1
      %s674 = scalar_select %p673, %s27, 1
      %s675 = scalar_lea.vmem %s14, %s674
      %p676 = scmp.lt.s32.totalorder %s27, 1
      %s677 = scalar_select %p676, %s27, 1
      %s678 = scalar_lea.vmem %s15, %s677
      %p679 = scmp.eq.s32.totalorder %s27, 0
      // Predicated region
      $region85: #{bert_model_train_forward.2} parent=83 // pred_check
        %p680 = pneg %p679
      $region86: #{bert_model_train_forward.2} parent=83 // pred_check_branch
        %682 = sbr.rel (%p680) target = $region88
      $region87: #{bert_model_train_forward.2} parent=83 // pred_region
        %v683 = vld [vmem:[%s0] sm:$0xff]
        %v684 = vld [vmem:[%s0 + $0x8] sm:$0xff]
        %v685 = vld [vmem:[%s2] sm:$0x1]
        %v686 = vld [vmem:[%s3] sm:$0x1]
        %vm687 = vcmask 261120
        %v688 = vsel %vm687, %v683, 0.0
        %689 = vadd.xlane.f32.xlu0 %v688
        %v690 = vpop.xlane.xlu0 %689
        %v691 = vsel %vm687, %v684, 0.0
        %692 = vadd.xlane.f32.xlu0 %v691
        %v693 = vpop.xlane.xlu0 %692
        %v694 = vrcp.pop 32.0
        %v695 = vmul.f32 32.0, %v694
        %v696 = vsub.f32 1.0, %v695
        %v697 = vmul.f32 %v694, %v696
        %v698 = vadd.f32 %v694, %v697
        %vm699 = vweird.f32 %v694
        %v700 = vsel %vm699, %v694, %v698
        %v701 = vmul.f32 %v690, %v700
        %v702 = vmul.f32 %v693, %v700
        %v703 = vsub.f32 %v683, %v701
        %v704 = vsub.f32 %v684, %v702
        %v705 = vmul.f32 %v703, %v703
        %v706 = vmul.f32 %v704, %v704
        %v707 = vsel %vm687, %v705, 0.0
        %708 = vadd.xlane.f32.xlu0 %v707
        %v709 = vpop.xlane.xlu0 %708
        %v710 = vsel %vm687, %v706, 0.0
        %711 = vadd.xlane.f32.xlu0 %v710
        %v712 = vpop.xlane.xlu0 %711
        %v713 = vmul.f32 %v709, %v700
        %v714 = vmul.f32 %v712, %v700
        %v715 = vadd.f32 %v713, 1e-12
        %v716 = vadd.f32 %v714, 1e-12
        %v717 = vrsqrt.pop %v715
        %v718 = vmul.f32 %v717, %v715
        %v719 = vmul.f32 %v718, %v717
        %v720 = vmul.f32 0.5, %v719
        %v721 = vsub.f32 1.5, %v720
        %v722 = vmul.f32 %v717, %v721
        %vm723 = vweird.f32 %v715
        %vm724 = vweird.f32 %v717
        %vm725 = vmor %vm723, %vm724
        %v726 = vsel %vm725, %v717, %v722
        %v727 = vrsqrt.pop %v716
        %v728 = vmul.f32 %v727, %v716
        %v729 = vmul.f32 %v728, %v727
        %v730 = vmul.f32 0.5, %v729
        %v731 = vsub.f32 1.5, %v730
        %v732 = vmul.f32 %v727, %v731
        %vm733 = vweird.f32 %v716
        %vm734 = vweird.f32 %v727
        %vm735 = vmor %vm733, %vm734
        %v736 = vsel %vm735, %v727, %v732
        %v737 = vmul.f32 %v703, %v726
        %v738 = vmul.f32 %v704, %v736
        %v740 = vperm.slane %v685, 0
        %v742 = vmul.f32 %v737, %v740
        %v743 = vmul.f32 %v738, %v740
        %v745 = vperm.slane %v686, 0
        %v747 = vadd.f32 %v742, %v745
        %v748 = vadd.f32 %v743, %v745
        %749 = vst.msk [vmem:[#allocation2] sm:$0xff] %vm687, %v747
        %750 = vst.msk [vmem:[#allocation2 + $0x8] sm:$0xff] %vm687, %v748
      $region88: #{bert_model_train_forward.2} parent=83 // pred_fallthru
        _
      %v751 = vld [vmem:[#allocation2] sm:$0xff]
      %v752 = vld [vmem:[#allocation2 + $0x8] sm:$0xff]
      %v753 = vld [vmem:[%s1] sm:$0xff]
      %v754 = vld [vmem:[%s1 + $0x8] sm:$0xff]
      %v755 = vld [vmem:[%s639] sm:$0xff]
      %v756 = vld [vmem:[%s639 + $0x8] sm:$0xff]
      %v757 = vld [vmem:[%s639 + $0x10] sm:$0xff]
      %v758 = vld [vmem:[%s639 + $0x18] sm:$0xff]
      %v759 = vld [vmem:[%s642] sm:$0x1]
      %v761 = vperm.slane %v759, 0
      %vm763 = vcmask 261120
      %v765 = vsel %vm763, %v751, 0
      %v768 = vsel %vm763, %v752, 0
      %770 = vmatpush.msra.mxu0 0.0
      %771 = vmatpush.msra.mxu0 0.0
      %772 = vmatpush.msra.mxu0 0.0
      %773 = vmatpush.msra.mxu0 0.0
      %774 = vmatpush.msra.mxu0 0.0
      %775 = vmatpush.msra.mxu0 0.0
      %776 = vmatpush.msra.mxu0 0.0
      %777 = vmatpush.msra.mxu0 0.0
      %778 = vmatpush.msra.mxu0 0.0
      %779 = vmatpush.msra.mxu0 0.0
      %780 = vmatpush.msra.mxu0 0.0
      %781 = vmatpush.msra.mxu0 0.0
      %782 = vmatpush.msra.mxu0 %v758
      %783 = vmatpush.msra.mxu0 %v757
      %784 = vmatpush.msra.mxu0 %v756
      %785 = vmatpush.msra.mxu0 %v755
      %786 = vmatmul.f32.gmra.mxu0 %v765
      %v787 = vpop.f32.mrf.mxu0
      %v788 = vadd.f32 %v761, %v787
      %789 = vmatmul.f32.gmra.mxu0 %v768
      %v790 = vpop.f32.mrf.mxu0
      %v791 = vadd.f32 %v761, %v790
      %792 = vdwg.mxu0
      %v793 = vld [vmem:[%s647] sm:$0xff]
      %v794 = vld [vmem:[%s647 + $0x8] sm:$0xff]
      %v795 = vld [vmem:[%s647 + $0x10] sm:$0xff]
      %v796 = vld [vmem:[%s647 + $0x18] sm:$0xff]
      %799 = vrot.lane.b32.xlu0 %v788, 96
      %v800 = vpop.permute.xlu0 %799
      %801 = vrot.lane.b32.xlu0 %v791, 96
      %v802 = vpop.permute.xlu0 %801
      %vm803 = vcmask 130048
      %v804 = vsel %vm803, %v788, 0
      %v806 = vsel %vm803, %v791, 0
      %v808 = vsel %vm803, %v800, 0
      %v810 = vsel %vm803, %v802, 0
      %812 = vmatpush.xpose.msra.mxu0 0.0
      %813 = vmatpush.xpose.msra.mxu0 0.0
      %814 = vmatpush.xpose.msra.mxu0 0.0
      %815 = vmatpush.xpose.msra.mxu0 0.0
      %816 = vmatpush.xpose.msra.mxu0 0.0
      %817 = vmatpush.xpose.msra.mxu0 0.0
      %818 = vmatpush.xpose.msra.mxu0 0.0
      %819 = vmatpush.xpose.msra.mxu0 0.0
      %820 = vmatpush.xpose.msra.mxu0 0.0
      %821 = vmatpush.xpose.msra.mxu0 0.0
      %822 = vmatpush.xpose.msra.mxu0 0.0
      %823 = vmatpush.xpose.msra.mxu0 0.0
      %824 = vmatpush.xpose.msra.mxu0 0.0
      %825 = vmatpush.xpose.msra.mxu0 0.0
      %826 = vmatpush.xpose.msra.mxu0 %v810
      %827 = vmatpush.xpose.msra.mxu0 %v808
      %828 = vmatmul.f32.gmra.mxu0 %v804
      %v829 = vpop.f32.mrf.mxu0
      %v830 = vadd.f32 0.0, %v829
      %831 = vmatmul.f32.gmra.mxu0 %v806
      %v832 = vpop.f32.mrf.mxu0
      %v833 = vadd.f32 0.0, %v832
      %834 = vdwg.mxu0
      %v835 = vmul.f32 %v830, 0.25
      %v836 = vmul.f32 %v833, 0.25
      %v837 = vadd.f32 %v835, %v753
      %v838 = vadd.f32 %v836, %v754
      %v839 = vsel %vm803, %v837, -inf
      %840 = vmax.xlane.f32.xlu0 %v839
      %v841 = vpop.xlane.xlu0 %840
      %v842 = vsel %vm803, %v838, -inf
      %843 = vmax.xlane.f32.xlu0 %v842
      %v844 = vpop.xlane.xlu0 %843
      %v845 = vsub.f32 %v837, %v841
      %v846 = vsub.f32 %v838, %v844
      %v847 = vmul.f32 %v845, 1.442695
      %v848 = vpow.pop %v847
      %v849 = vmul.f32 %v846, 1.442695
      %v850 = vpow.pop %v849
      %v851 = vsel %vm803, %v848, 0.0
      %852 = vadd.xlane.f32.xlu0 %v851
      %v853 = vpop.xlane.xlu0 %852
      %v854 = vsel %vm803, %v850, 0.0
      %855 = vadd.xlane.f32.xlu0 %v854
      %v856 = vpop.xlane.xlu0 %855
      %v857 = vrcp.pop %v853
      %v858 = vrcp.pop %v856
      %v859 = vmul.f32 %v848, %v857
      %v860 = vmul.f32 %v850, %v858
      %861 = vrot.lane.b32.xlu0 %v788, 64
      %v862 = vpop.permute.xlu0 %861
      %863 = vrot.lane.b32.xlu0 %v791, 64
      %v864 = vpop.permute.xlu0 %863
      %v868 = vsel %vm803, %v859, 0
      %v871 = vsel %vm803, %v860, 0
      %873 = vmatpush.msra.mxu0 0.0
      %874 = vmatpush.msra.mxu0 0.0
      %875 = vmatpush.msra.mxu0 0.0
      %876 = vmatpush.msra.mxu0 0.0
      %877 = vmatpush.msra.mxu0 0.0
      %878 = vmatpush.msra.mxu0 0.0
      %879 = vmatpush.msra.mxu0 0.0
      %880 = vmatpush.msra.mxu0 0.0
      %881 = vmatpush.msra.mxu0 0.0
      %882 = vmatpush.msra.mxu0 0.0
      %883 = vmatpush.msra.mxu0 0.0
      %884 = vmatpush.msra.mxu0 0.0
      %885 = vmatpush.msra.mxu0 0.0
      %886 = vmatpush.msra.mxu0 0.0
      %887 = vmatpush.msra.mxu0 %v864
      %888 = vmatpush.msra.mxu0 %v862
      %889 = vmatmul.f32.gmra.mxu0 %v868
      %v890 = vpop.f32.mrf.mxu0
      %v891 = vadd.f32 0.0, %v890
      %892 = vmatmul.f32.gmra.mxu0 %v871
      %v893 = vpop.f32.mrf.mxu0
      %v894 = vadd.f32 0.0, %v893
      %895 = vdwg.mxu0
      %896 = vrot.lane.b32.xlu0 %v788, 112
      %v897 = vpop.permute.xlu0 %896
      %898 = vrot.lane.b32.xlu0 %v791, 112
      %v899 = vpop.permute.xlu0 %898
      %900 = vrot.lane.b32.xlu0 %v788, 80
      %v901 = vpop.permute.xlu0 %900
      %902 = vrot.lane.b32.xlu0 %v791, 80
      %v903 = vpop.permute.xlu0 %902
      %v904 = vsel %vm803, %v897, 0
      %v906 = vsel %vm803, %v899, 0
      %v908 = vsel %vm803, %v901, 0
      %v910 = vsel %vm803, %v903, 0
      %912 = vmatpush.xpose.msra.mxu0 0.0
      %913 = vmatpush.xpose.msra.mxu0 0.0
      %914 = vmatpush.xpose.msra.mxu0 0.0
      %915 = vmatpush.xpose.msra.mxu0 0.0
      %916 = vmatpush.xpose.msra.mxu0 0.0
      %917 = vmatpush.xpose.msra.mxu0 0.0
      %918 = vmatpush.xpose.msra.mxu0 0.0
      %919 = vmatpush.xpose.msra.mxu0 0.0
      %920 = vmatpush.xpose.msra.mxu0 0.0
      %921 = vmatpush.xpose.msra.mxu0 0.0
      %922 = vmatpush.xpose.msra.mxu0 0.0
      %923 = vmatpush.xpose.msra.mxu0 0.0
      %924 = vmatpush.xpose.msra.mxu0 0.0
      %925 = vmatpush.xpose.msra.mxu0 0.0
      %926 = vmatpush.xpose.msra.mxu0 %v910
      %927 = vmatpush.xpose.msra.mxu0 %v908
      %928 = vmatmul.f32.gmra.mxu0 %v904
      %v929 = vpop.f32.mrf.mxu0
      %v930 = vadd.f32 0.0, %v929
      %931 = vmatmul.f32.gmra.mxu0 %v906
      %v932 = vpop.f32.mrf.mxu0
      %v933 = vadd.f32 0.0, %v932
      %934 = vdwg.mxu0
      %v935 = vmul.f32 %v930, 0.25
      %v936 = vmul.f32 %v933, 0.25
      %v937 = vadd.f32 %v935, %v753
      %v938 = vadd.f32 %v936, %v754
      %v939 = vsel %vm803, %v937, -inf
      %940 = vmax.xlane.f32.xlu0 %v939
      %v941 = vpop.xlane.xlu0 %940
      %v942 = vsel %vm803, %v938, -inf
      %943 = vmax.xlane.f32.xlu0 %v942
      %v944 = vpop.xlane.xlu0 %943
      %v945 = vsub.f32 %v937, %v941
      %v946 = vsub.f32 %v938, %v944
      %v947 = vmul.f32 %v945, 1.442695
      %v948 = vpow.pop %v947
      %v949 = vmul.f32 %v946, 1.442695
      %v950 = vpow.pop %v949
      %v951 = vsel %vm803, %v948, 0.0
      %952 = vadd.xlane.f32.xlu0 %v951
      %v953 = vpop.xlane.xlu0 %952
      %v954 = vsel %vm803, %v950, 0.0
      %955 = vadd.xlane.f32.xlu0 %v954
      %v956 = vpop.xlane.xlu0 %955
      %v957 = vrcp.pop %v953
      %v958 = vrcp.pop %v956
      %v959 = vmul.f32 %v948, %v957
      %v960 = vmul.f32 %v950, %v958
      %961 = vrot.lane.b32.xlu0 %v788, 48
      %v962 = vpop.permute.xlu0 %961
      %963 = vrot.lane.b32.xlu0 %v791, 48
      %v964 = vpop.permute.xlu0 %963
      %v968 = vsel %vm803, %v959, 0
      %v971 = vsel %vm803, %v960, 0
      %973 = vmatpush.msra.mxu0 0.0
      %974 = vmatpush.msra.mxu0 0.0
      %975 = vmatpush.msra.mxu0 0.0
      %976 = vmatpush.msra.mxu0 0.0
      %977 = vmatpush.msra.mxu0 0.0
      %978 = vmatpush.msra.mxu0 0.0
      %979 = vmatpush.msra.mxu0 0.0
      %980 = vmatpush.msra.mxu0 0.0
      %981 = vmatpush.msra.mxu0 0.0
      %982 = vmatpush.msra.mxu0 0.0
      %983 = vmatpush.msra.mxu0 0.0
      %984 = vmatpush.msra.mxu0 0.0
      %985 = vmatpush.msra.mxu0 0.0
      %986 = vmatpush.msra.mxu0 0.0
      %987 = vmatpush.msra.mxu0 %v964
      %988 = vmatpush.msra.mxu0 %v962
      %989 = vmatmul.f32.gmra.mxu0 %v968
      %v990 = vpop.f32.mrf.mxu0
      %v991 = vadd.f32 0.0, %v990
      %992 = vmatmul.f32.gmra.mxu0 %v971
      %v993 = vpop.f32.mrf.mxu0
      %v994 = vadd.f32 0.0, %v993
      %995 = vdwg.mxu0
      %v997 = vsel %vm803, %v991, 0
      %v1000 = vsel %vm803, %v994, 0
      %1002 = vmatpush.msra.mxu0 0.0
      %1003 = vmatpush.msra.mxu0 0.0
      %1004 = vmatpush.msra.mxu0 0.0
      %1005 = vmatpush.msra.mxu0 0.0
      %1006 = vmatpush.msra.mxu0 0.0
      %1007 = vmatpush.msra.mxu0 0.0
      %1008 = vmatpush.msra.mxu0 0.0
      %1009 = vmatpush.msra.mxu0 0.0
      %1010 = vmatpush.msra.mxu0 0.0
      %1011 = vmatpush.msra.mxu0 0.0
      %1012 = vmatpush.msra.mxu0 0.0
      %1013 = vmatpush.msra.mxu0 0.0
      %1014 = vmatpush.msra.mxu0 0.0
      %1015 = vmatpush.msra.mxu0 0.0
      %1016 = vmatpush.msra.mxu0 %v796
      %1017 = vmatpush.msra.mxu0 %v795
      %1018 = vmatmul.f32.gmra.mxu0 %v997
      %v1019 = vpop.f32.mrf.mxu0
      %v1020 = vadd.f32 0.0, %v1019
      %1021 = vmatmul.f32.gmra.mxu0 %v1000
      %v1022 = vpop.f32.mrf.mxu0
      %v1023 = vadd.f32 0.0, %v1022
      %1024 = vdwg.mxu0
      %v1026 = vsel %vm803, %v891, 0
      %v1029 = vsel %vm803, %v894, 0
      %1031 = vmatpush.msra.mxu0 0.0
      %1032 = vmatpush.msra.mxu0 0.0
      %1033 = vmatpush.msra.mxu0 0.0
      %1034 = vmatpush.msra.mxu0 0.0
      %1035 = vmatpush.msra.mxu0 0.0
      %1036 = vmatpush.msra.mxu0 0.0
      %1037 = vmatpush.msra.mxu0 0.0
      %1038 = vmatpush.msra.mxu0 0.0
      %1039 = vmatpush.msra.mxu0 0.0
      %1040 = vmatpush.msra.mxu0 0.0
      %1041 = vmatpush.msra.mxu0 0.0
      %1042 = vmatpush.msra.mxu0 0.0
      %1043 = vmatpush.msra.mxu0 0.0
      %1044 = vmatpush.msra.mxu0 0.0
      %1045 = vmatpush.msra.mxu0 %v794
      %1046 = vmatpush.msra.mxu0 %v793
      %1047 = vmatmul.f32.gmra.mxu0 %v1026
      %v1048 = vpop.f32.mrf.mxu0
      %v1049 = vadd.f32 %v1020, %v1048
      %1050 = vmatmul.f32.gmra.mxu0 %v1029
      %v1051 = vpop.f32.mrf.mxu0
      %v1052 = vadd.f32 %v1023, %v1051
      %1053 = vdwg.mxu0
      %v1054 = vld [vmem:[%s650] sm:$0x1]
      %v1056 = vperm.slane %v1054, 0
      %v1058 = vadd.f32 %v1049, %v1056
      %v1059 = vadd.f32 %v1052, %v1056
      %v1060 = vadd.f32 %v1058, %v751
      %v1061 = vadd.f32 %v1059, %v752
      %v1062 = vld [vmem:[%s653] sm:$0x1]
      %v1063 = vld [vmem:[%s656] sm:$0x1]
      %v1064 = vsel %vm763, %v1060, 0.0
      %1065 = vadd.xlane.f32.xlu0 %v1064
      %v1066 = vpop.xlane.xlu0 %1065
      %v1067 = vsel %vm763, %v1061, 0.0
      %1068 = vadd.xlane.f32.xlu0 %v1067
      %v1069 = vpop.xlane.xlu0 %1068
      %v1070 = vrcp.pop 32.0
      %v1071 = vmul.f32 32.0, %v1070
      %v1072 = vsub.f32 1.0, %v1071
      %v1073 = vmul.f32 %v1070, %v1072
      %v1074 = vadd.f32 %v1070, %v1073
      %vm1075 = vweird.f32 %v1070
      %v1076 = vsel %vm1075, %v1070, %v1074
      %v1077 = vmul.f32 %v1066, %v1076
      %v1078 = vmul.f32 %v1069, %v1076
      %v1079 = vsub.f32 %v1060, %v1077
      %v1080 = vsub.f32 %v1061, %v1078
      %v1081 = vmul.f32 %v1079, %v1079
      %v1082 = vmul.f32 %v1080, %v1080
      %v1083 = vsel %vm763, %v1081, 0.0
      %1084 = vadd.xlane.f32.xlu0 %v1083
      %v1085 = vpop.xlane.xlu0 %1084
      %v1086 = vsel %vm763, %v1082, 0.0
      %1087 = vadd.xlane.f32.xlu0 %v1086
      %v1088 = vpop.xlane.xlu0 %1087
      %v1089 = vmul.f32 %v1085, %v1076
      %v1090 = vmul.f32 %v1088, %v1076
      %v1091 = vadd.f32 %v1089, 1e-12
      %v1092 = vadd.f32 %v1090, 1e-12
      %v1093 = vrsqrt.pop %v1091
      %v1094 = vmul.f32 %v1093, %v1091
      %v1095 = vmul.f32 %v1094, %v1093
      %v1096 = vmul.f32 0.5, %v1095
      %v1097 = vsub.f32 1.5, %v1096
      %v1098 = vmul.f32 %v1093, %v1097
      %vm1099 = vweird.f32 %v1091
      %vm1100 = vweird.f32 %v1093
      %vm1101 = vmor %vm1099, %vm1100
      %v1102 = vsel %vm1101, %v1093, %v1098
      %v1103 = vrsqrt.pop %v1092
      %v1104 = vmul.f32 %v1103, %v1092
      %v1105 = vmul.f32 %v1104, %v1103
      %v1106 = vmul.f32 0.5, %v1105
      %v1107 = vsub.f32 1.5, %v1106
      %v1108 = vmul.f32 %v1103, %v1107
      %vm1109 = vweird.f32 %v1092
      %vm1110 = vweird.f32 %v1103
      %vm1111 = vmor %vm1109, %vm1110
      %v1112 = vsel %vm1111, %v1103, %v1108
      %v1113 = vmul.f32 %v1079, %v1102
      %v1114 = vmul.f32 %v1080, %v1112
      %v1116 = vperm.slane %v1062, 0
      %v1118 = vmul.f32 %v1113, %v1116
      %v1119 = vmul.f32 %v1114, %v1116
      %v1121 = vperm.slane %v1063, 0
      %v1123 = vadd.f32 %v1118, %v1121
      %v1124 = vadd.f32 %v1119, %v1121
      %v1125 = vld [vmem:[%s661] sm:$0xff]
      %v1126 = vld [vmem:[%s661 + $0x8] sm:$0xff]
      %v1127 = vld [vmem:[%s661 + $0x10] sm:$0xff]
      %v1128 = vld [vmem:[%s661 + $0x18] sm:$0xff]
      %v1129 = vld [vmem:[%s664] sm:$0x1]
      %v1131 = vperm.slane %v1129, 0
      %v1134 = vsel %vm763, %v1123, 0
      %v1137 = vsel %vm763, %v1124, 0
      %1139 = vmatpush.msra.mxu0 0.0
      %1140 = vmatpush.msra.mxu0 0.0
      %1141 = vmatpush.msra.mxu0 0.0
      %1142 = vmatpush.msra.mxu0 0.0
      %1143 = vmatpush.msra.mxu0 0.0
      %1144 = vmatpush.msra.mxu0 0.0
      %1145 = vmatpush.msra.mxu0 0.0
      %1146 = vmatpush.msra.mxu0 0.0
      %1147 = vmatpush.msra.mxu0 0.0
      %1148 = vmatpush.msra.mxu0 0.0
      %1149 = vmatpush.msra.mxu0 0.0
      %1150 = vmatpush.msra.mxu0 0.0
      %1151 = vmatpush.msra.mxu0 %v1128
      %1152 = vmatpush.msra.mxu0 %v1127
      %1153 = vmatpush.msra.mxu0 %v1126
      %1154 = vmatpush.msra.mxu0 %v1125
      %1155 = vmatmul.f32.gmra.mxu0 %v1134
      %v1156 = vpop.f32.mrf.mxu0
      %v1157 = vadd.f32 %v1131, %v1156
      %1158 = vmatmul.f32.gmra.mxu0 %v1137
      %v1159 = vpop.f32.mrf.mxu0
      %v1160 = vadd.f32 %v1131, %v1159
      %1161 = vdwg.mxu0
      %v1162 = vmul.f32 %v1157, 0.5
      %v1163 = vmul.f32 %v1160, 0.5
      %v1164 = vmul.f32 %v1157, 0.044715
      %v1165 = vmul.f32 %v1160, 0.044715
      %v1166 = vmul.f32 %v1164, %v1157
      %v1167 = vmul.f32 %v1165, %v1160
      %v1168 = vmul.f32 %v1166, %v1157
      %v1169 = vmul.f32 %v1167, %v1160
      %v1170 = vadd.f32 %v1157, %v1168
      %v1171 = vadd.f32 %v1160, %v1169
      %v1172 = vmul.f32 %v1170, 0.7978846
      %v1173 = vmul.f32 %v1171, 0.7978846
      %v1174 = vtanh.pop %v1172
      %v1175 = vtanh.pop %v1173
      %v1176 = vadd.f32 %v1174, 1.0
      %v1177 = vadd.f32 %v1175, 1.0
      %v1178 = vmul.f32 %v1162, %v1176
      %v1179 = vmul.f32 %v1163, %v1177
      %v1180 = vld [vmem:[%s669] sm:$0xff]
      %v1181 = vld [vmem:[%s669 + $0x8] sm:$0xff]
      %v1182 = vld [vmem:[%s669 + $0x10] sm:$0xff]
      %v1183 = vld [vmem:[%s669 + $0x18] sm:$0xff]
      %v1184 = vld [vmem:[%s669 + $0x20] sm:$0xff]
      %v1185 = vld [vmem:[%s669 + $0x28] sm:$0xff]
      %v1186 = vld [vmem:[%s669 + $0x30] sm:$0xff]
      %v1187 = vld [vmem:[%s669 + $0x38] sm:$0xff]
      %v1188 = vld [vmem:[%s672] sm:$0x1]
      %v1190 = vperm.slane %v1188, 0
      %vm1192 = vcmask 523264
      %v1194 = vsel %vm1192, %v1178, 0
      %v1197 = vsel %vm1192, %v1179, 0
      %1199 = vmatpush.msra.mxu0 0.0
      %1200 = vmatpush.msra.mxu0 0.0
      %1201 = vmatpush.msra.mxu0 0.0
      %1202 = vmatpush.msra.mxu0 0.0
      %1203 = vmatpush.msra.mxu0 0.0
      %1204 = vmatpush.msra.mxu0 0.0
      %1205 = vmatpush.msra.mxu0 0.0
      %1206 = vmatpush.msra.mxu0 0.0
      %1207 = vmatpush.msra.mxu0 %v1187
      %1208 = vmatpush.msra.mxu0 %v1186
      %1209 = vmatpush.msra.mxu0 %v1185
      %1210 = vmatpush.msra.mxu0 %v1184
      %1211 = vmatpush.msra.mxu0 %v1183
      %1212 = vmatpush.msra.mxu0 %v1182
      %1213 = vmatpush.msra.mxu0 %v1181
      %1214 = vmatpush.msra.mxu0 %v1180
      %1215 = vmatmul.f32.gmra.mxu0 %v1194
      %v1216 = vpop.f32.mrf.mxu0
      %v1217 = vadd.f32 %v1190, %v1216
      %1218 = vmatmul.f32.gmra.mxu0 %v1197
      %v1219 = vpop.f32.mrf.mxu0
      %v1220 = vadd.f32 %v1190, %v1219
      %1221 = vdwg.mxu0
      %v1222 = vadd.f32 %v1217, %v1123
      %v1223 = vadd.f32 %v1220, %v1124
      %v1224 = vld [vmem:[%s675] sm:$0x1]
      %v1225 = vld [vmem:[%s678] sm:$0x1]
      %v1226 = vsel %vm763, %v1222, 0.0
      %1227 = vadd.xlane.f32.xlu0 %v1226
      %v1228 = vpop.xlane.xlu0 %1227
      %v1229 = vsel %vm763, %v1223, 0.0
      %1230 = vadd.xlane.f32.xlu0 %v1229
      %v1231 = vpop.xlane.xlu0 %1230
      %v1232 = vmul.f32 %v1228, %v1076
      %v1233 = vmul.f32 %v1231, %v1076
      %v1234 = vsub.f32 %v1222, %v1232
      %v1235 = vsub.f32 %v1223, %v1233
      %v1236 = vmul.f32 %v1234, %v1234
      %v1237 = vmul.f32 %v1235, %v1235
      %v1238 = vsel %vm763, %v1236, 0.0
      %1239 = vadd.xlane.f32.xlu0 %v1238
      %v1240 = vpop.xlane.xlu0 %1239
      %v1241 = vsel %vm763, %v1237, 0.0
      %1242 = vadd.xlane.f32.xlu0 %v1241
      %v1243 = vpop.xlane.xlu0 %1242
      %v1244 = vmul.f32 %v1240, %v1076
      %v1245 = vmul.f32 %v1243, %v1076
      %v1246 = vadd.f32 %v1244, 1e-12
      %v1247 = vadd.f32 %v1245, 1e-12
      %v1248 = vrsqrt.pop %v1246
      %v1249 = vmul.f32 %v1248, %v1246
      %v1250 = vmul.f32 %v1249, %v1248
      %v1251 = vmul.f32 0.5, %v1250
      %v1252 = vsub.f32 1.5, %v1251
      %v1253 = vmul.f32 %v1248, %v1252
      %vm1254 = vweird.f32 %v1246
      %vm1255 = vweird.f32 %v1248
      %vm1256 = vmor %vm1254, %vm1255
      %v1257 = vsel %vm1256, %v1248, %v1253
      %v1258 = vrsqrt.pop %v1247
      %v1259 = vmul.f32 %v1258, %v1247
      %v1260 = vmul.f32 %v1259, %v1258
      %v1261 = vmul.f32 0.5, %v1260
      %v1262 = vsub.f32 1.5, %v1261
      %v1263 = vmul.f32 %v1258, %v1262
      %vm1264 = vweird.f32 %v1247
      %vm1265 = vweird.f32 %v1258
      %vm1266 = vmor %vm1264, %vm1265
      %v1267 = vsel %vm1266, %v1258, %v1263
      %v1268 = vmul.f32 %v1234, %v1257
      %v1269 = vmul.f32 %v1235, %v1267
      %v1271 = vperm.slane %v1224, 0
      %v1273 = vmul.f32 %v1268, %v1271
      %v1274 = vmul.f32 %v1269, %v1271
      %v1276 = vperm.slane %v1225, 0
      %v1278 = vadd.f32 %v1273, %v1276
      %v1279 = vadd.f32 %v1274, %v1276
      %1280 = vst.msk [vmem:[#allocation2] sm:$0xff] %vm763, %v1278
      %1281 = vst.msk [vmem:[#allocation2 + $0x8] sm:$0xff] %vm763, %v1279
      %1282 = vst.msk [vmem:[%s16] sm:$0xff] %vm763, %v1278
      %1283 = vst.msk [vmem:[%s16 + $0x8] sm:$0xff] %vm763, %v1279
      // Predicated region
      $region89: #{bert_model_train_forward.2} parent=83 // pred_check
        %p1284 = pneg %p436
      $region90: #{bert_model_train_forward.2} parent=83 // pred_check_branch
        %1286 = sbr.rel (%p1284) target = $region92
      $region91: #{bert_model_train_forward.2} parent=83 // pred_region
        _
      $region92: #{bert_model_train_forward.2} parent=83 // pred_fallthru
        _
      // Predicated region
      $region93: #{bert_model_train_forward.2} parent=83 // pred_check
        %p1287 = pneg %p436
      $region94: #{bert_model_train_forward.2} parent=83 // pred_check_branch
        %1289 = sbr.rel (%p1287) target = $region96
      $region95: #{bert_model_train_forward.2} parent=83 // pred_region
        _
      $region96: #{bert_model_train_forward.2} parent=83 // pred_fallthru
        _
    $region84: #{bert_model_train_forward.2} parent=5 // pred_fallthru
      _
    %p1290 = scmp.le.s32.totalorder 2, %s22
    // Predicated region
    $region97: #{bert_model_train_forward.2} parent=5 // pred_check
      %p1291 = pneg %p1290
    $region98: #{bert_model_train_forward.2} parent=5 // pred_check_branch
      %1293 = sbr.rel (%p1291) target = $region100
    $region99: #{bert_model_train_forward.2} parent=5 // pred_region
      %s1294 = ssub.s32 %s22, 2
    $region100: #{bert_model_train_forward.2} parent=5 // pred_fallthru
      _
  $region6: #{bert_model_train_forward.2} parent=0 // loop_footer
    %s26 = sadd.s32 1, %s22
  $region7: #{bert_model_train_forward.2} parent=0 // loop_footer_branch
    %21 = sbr.rel target = $region3
  $region8: #{bert_model_train_forward.2} parent=0 // loop_exit
    _

</llo_original>
